<compile_context>
chip_gen: v5e
topology: v5e:2x2
jax: 0.10.0
libtpu: 0.0.40
codegen_flags: <defaults>
</compile_context>

<pallas_src>
import functools

import jax
import jax.numpy as jnp
from jax import lax
from jax.experimental import pallas as pl
from jax.experimental.pallas import tpu as pltpu

LANE = 128


# ----------------------------- in-kernel helpers -----------------------------

def _softplus(x):
    # matches torch.nn.functional.softplus (beta=1, threshold=20)
    return jnp.where(x > 20.0, x, jnp.log1p(jnp.exp(jnp.minimum(x, 20.0))))


def _cnn3x3_kernel(n_conv, H, n_real, x_ref, *refs):
    """refs = [g0, b0, band0, ..., g_{n_conv-1}, b_{n_conv-1}, band_{n_conv-1},
               g_last, b_last, fc1_bd, fc2a_bd, fc2b_bd, out_ref].

    Activations are lane-dense (rows, W*C); rows = NB*H stacks the NB samples of
    this block on the sublane axis so every matmul sees M = NB*H.
    """
    out_ref = refs[-1]
    params = refs[:-1]

    NB = x_ref.shape[0]
    M = NB * H

    x0 = x_ref[...].astype(jnp.float32).reshape(M, -1)       # (M, W*C0p)

    def per_sample_sum(v3):                                   # (NB,H,WC) -> (NB,1,1)
        return jnp.sum(jnp.sum(v3, axis=2, keepdims=True), axis=1, keepdims=True)

    def layernorm(h, gamma, beta, n, two_pass):
        # nn.LayerNorm((C,H,W)): per-sample stats over all C*H*W elements.
        # `n` counts only REAL elements (zero-padded channels add 0 to the sums,
        # so the single-pass form stays exact for the padded layer 0).
        h3 = h.reshape(NB, H, -1)
        inv_n = 1.0 / n
        mean = per_sample_sum(h3) * inv_n
        d = h3 - mean
        if two_pass:        # centered variance: safer for positive post-softplus data
            var = per_sample_sum(d * d) * inv_n
        else:               # single pass: exact with zero-padded lanes (raw input)
            var = per_sample_sum(h3 * h3) * inv_n - mean * mean
        inv = lax.rsqrt(var + 1e-5)
        return (d * inv * gamma[None] + beta[None]).reshape(M, -1)

    def conv3x3(h, band):
        # 3x3 SAME conv as ONE deep-K matmul: ky taps are per-sample sublane
        # shifts packed on the lane axis; kx taps + channel mix live in `band`.
        h3 = h.reshape(NB, H, -1)
        zrow = jnp.zeros_like(h3[:, :1, :])
        h_up = jnp.concatenate([zrow, h3[:, :H - 1, :]], axis=1).reshape(M, -1)
        h_dn = jnp.concatenate([h3[:, 1:, :], zrow], axis=1).reshape(M, -1)
        im = jnp.concatenate([h_up, h, h_dn], axis=-1)        # (M, 3*W*Cin)
        return jnp.dot(im, band, preferred_element_type=jnp.float32)

    h = x0
    idx = 0
    for li in range(n_conv):                # sequence1: (LN -> conv3x3 -> softplus)*
        g = params[idx][...]
        b = params[idx + 1][...]
        band = params[idx + 2][...]
        idx += 3
        h = layernorm(h, g, b, n_real[li], two_pass=(li > 0))
        h = _softplus(conv3x3(h, band))

    g_last = params[idx][...]
    b_last = params[idx + 1][...]
    fc1_bd = params[idx + 2][...]           # (W*Cl,  W*2Cl) block-diagonal
    fc2a_bd = params[idx + 3][...]          # (W*2Cl, W*Cl)  block-diagonal (y part)
    fc2b_bd = params[idx + 4][...]          # (W*C0p, W*Cl)  block-diagonal (residual x)

    # sequence2: LN -> fc1(1x1) -> softplus
    h = layernorm(h, g_last, b_last, n_real[n_conv], two_pass=True)
    y = _softplus(jnp.dot(h, fc1_bd, preferred_element_type=jnp.float32))

    # residual: cat([y, x]) @ fc2  ==  y @ fc2_a + x @ fc2_b   (act_fn = identity)
    out = (jnp.dot(y, fc2a_bd, preferred_element_type=jnp.float32)
           + jnp.dot(x0, fc2b_bd, preferred_element_type=jnp.float32))
    out_ref[...] = out.reshape(NB, H, -1).astype(out_ref.dtype)   # lane-dense store


# ------------------------- wrapper-side weight prep --------------------------

def _conv3x3_to_band(w_hwio, W):
    """(3, 3, Cin, Cout) HWIO -> (3*W*Cin, W*Cout) banded matrix.

    band[(ky, wi, ci), (wo, co)] = w[ky, wi - wo + 1, ci, co] if |wi - wo| <= 1
    (the conv's zero W-padding is implicit in the band structure).
    """
    kH, kW, Cin, Cout = w_hwio.shape
    shifts = jnp.stack([jnp.eye(W, k=1 - kx, dtype=w_hwio.dtype)
                        for kx in range(kW)])                  # (kx, wi, wo)
    band = jnp.einsum("xab,yxio->yaibo", shifts, w_hwio)       # (ky, wi, ci, wo, co)
    return band.reshape(kH * W * Cin, W * Cout)


def _pointwise_to_blockdiag(w, W):
    """(Cin, Cout) 1x1-conv weight -> (W*Cin, W*Cout) block-diagonal matrix."""
    Cin, Cout = w.shape
    eye = jnp.eye(W, dtype=w.dtype)
    bd = jnp.einsum("ab,io->aibo", eye, w)                     # (wi, ci, wo, co)
    return bd.reshape(W * Cin, W * Cout)


# ---------------------------------- wrapper ----------------------------------

def cnn3x3_forward(x_nchw, params, channels, *, fuse_batch=True):
    """x_nchw: (N, C0, H, W) float32 -> (N, Cl, H, W).

    fuse_batch=True  : single grid step, samples stacked on sublanes (v5e/v6e).
    fuse_batch=False : grid=(N,) 'parallel' -- one sample per TensorCore (v7x).
    """
    gammas, betas, conv_ws, g_last, b_last, fc1_w, fc2_w = params
    N, C0, H, W = x_nchw.shape
    assert C0 == channels[0]
    L = len(channels)
    Cl = channels[-1]

    # Pad the input channel count so W*C0p is a multiple of 128 lanes.
    unit = max(1, LANE // W)
    C0p = ((C0 + unit - 1) // unit) * unit
    pad_c = C0p - C0

    x = jnp.transpose(x_nchw, (0, 2, 3, 1))                    # NHWC
    if pad_c:
        x = jnp.pad(x, ((0, 0), (0, 0), (0, 0), (0, pad_c)))
    x = x.reshape(N, H, W * C0p)

    gamma0 = jnp.pad(gammas[0], ((0, 0), (0, 0), (0, pad_c))) if pad_c else gammas[0]
    beta0 = jnp.pad(betas[0], ((0, 0), (0, 0), (0, pad_c))) if pad_c else betas[0]
    conv0 = (jnp.pad(conv_ws[0], ((0, 0), (0, 0), (0, pad_c), (0, 0)))
             if pad_c else conv_ws[0])

    in_ch = [C0p] + list(channels[1:])       # effective per-layer input widths

    nb = N if fuse_batch else 1
    grid = (1,) if fuse_batch else (N,)
    io_map = (lambda n: (0, 0, 0)) if fuse_batch else (lambda n: (n, 0, 0))

    inputs = [x]
    in_specs = [pl.BlockSpec((nb, H, W * C0p), io_map)]

    mm_kn = []                               # (K, Ncols) of every matmul (cost estimate)
    for i in range(L - 1):
        ci, co = in_ch[i], channels[i + 1]
        g = gamma0 if i == 0 else gammas[i]
        b = beta0 if i == 0 else betas[i]
        cw = conv0 if i == 0 else conv_ws[i]
        inputs += [g.reshape(H, W * ci), b.reshape(H, W * ci),
                   _conv3x3_to_band(cw, W)]
        in_specs += [
            pl.BlockSpec((H, W * ci), lambda n: (0, 0)),
            pl.BlockSpec((H, W * ci), lambda n: (0, 0)),
            pl.BlockSpec((3 * W * ci, W * co), lambda n: (0, 0)),
        ]
        mm_kn.append((3 * W * ci, W * co))

    fc1_bd = _pointwise_to_blockdiag(fc1_w, W)                 # (W*Cl, W*2Cl)
    fc2a_bd = _pointwise_to_blockdiag(fc2_w[:2 * Cl], W)       # (W*2Cl, W*Cl)
    fc2_x = fc2_w[2 * Cl:]
    if pad_c:
        fc2_x = jnp.pad(fc2_x, ((0, pad_c), (0, 0)))
    fc2b_bd = _pointwise_to_blockdiag(fc2_x, W)                # (W*C0p, W*Cl)

    inputs += [g_last.reshape(H, W * Cl), b_last.reshape(H, W * Cl),
               fc1_bd, fc2a_bd, fc2b_bd]
    in_specs += [
        pl.BlockSpec((H, W * Cl), lambda n: (0, 0)),
        pl.BlockSpec((H, W * Cl), lambda n: (0, 0)),
        pl.BlockSpec((W * Cl, W * 2 * Cl), lambda n: (0, 0)),
        pl.BlockSpec((W * 2 * Cl, W * Cl), lambda n: (0, 0)),
        pl.BlockSpec((W * C0p, W * Cl), lambda n: (0, 0)),
    ]
    mm_kn += [(W * Cl, W * 2 * Cl), (W * 2 * Cl, W * Cl), (W * C0p, W * Cl)]

    out_specs = pl.BlockSpec((nb, H, W * Cl), io_map)

    # Real (unpadded) LayerNorm element counts per layer.
    n_real = tuple(channels[i] * H * W for i in range(L))

    flops = 2 * N * H * sum(k * n for k, n in mm_kn)
    transcendentals = 2 * N * H * W * (sum(channels[1:]) + 2 * Cl)
    bytes_accessed = sum(int(a.size) * 4 for a in inputs) + N * H * W * Cl * 4

    # NOTE: with grid size 1 (fused) there is only one pipeline step, so the
    # grid-invariant parameter specs need no pl.Buffered(1) annotation; the
    # whole working set (<1 MiB) fits the default scoped VMEM on v5e/v6e/v7x.
    out = pl.pallas_call(
        functools.partial(_cnn3x3_kernel, L - 1, H, n_real),
        out_shape=jax.ShapeDtypeStruct((N, H, W * Cl), x.dtype),
        grid_spec=pltpu.PrefetchScalarGridSpec(
            num_scalar_prefetch=0,
            grid=grid,
            in_specs=in_specs,
            out_specs=out_specs,
        ),
        compiler_params=pltpu.CompilerParams(
            dimension_semantics=("arbitrary",) if fuse_batch else ("parallel",)),
        cost_estimate=pl.CostEstimate(flops=flops,
                                      transcendentals=transcendentals,
                                      bytes_accessed=bytes_accessed),
    )(*inputs)

    # (N, H, W*Cl) -> NCHW
    return jnp.transpose(out.reshape(N, H, W, Cl), (0, 3, 1, 2))


# --------------------------------- reference ---------------------------------

def reference_forward(x_nchw, params, channels):
    """Pure-JAX reference mirroring the PyTorch forward (NCHW in/out)."""
    gammas, betas, conv_ws, g_last, b_last, fc1_w, fc2_w = params
    x = jnp.transpose(x_nchw, (0, 2, 3, 1))

    def ln(h, g, b, eps=1e-5):
        m = jnp.mean(h, axis=(1, 2, 3), keepdims=True)
        v = jnp.mean((h - m) ** 2, axis=(1, 2, 3), keepdims=True)
        return (h - m) / jnp.sqrt(v + eps) * g[None] + b[None]

    h = x
    for i in range(len(channels) - 1):
        h = ln(h, gammas[i], betas[i])
        h = lax.conv_general_dilated(
            h, conv_ws[i], window_strides=(1, 1), padding="SAME",
            dimension_numbers=("NHWC", "HWIO", "NHWC"))
        h = _softplus(h)
    h = ln(h, g_last, b_last)
    y = _softplus(jnp.einsum("nhwc,cd->nhwd", h, fc1_w))
    z = jnp.concatenate([y, x], axis=-1)
    out = jnp.einsum("nhwc,cd->nhwd", z, fc2_w)
    return jnp.transpose(out, (0, 3, 1, 2))


if __name__ == "__main__":
    key = jax.random.PRNGKey(0)
    N, H, W = 2, 16, 16
    channels = [4, 8, 8]          # patch_size=(16,16); two 3x3 conv stages
    C0, Cl = channels[0], channels[-1]

    keys = iter(jax.random.split(key, 3 * (len(channels) - 1) + 5))

    gammas, betas, conv_ws = [], [], []
    for i in range(len(channels) - 1):
        ci, co = channels[i], channels[i + 1]
        gammas.append(1.0 + 0.1 * jax.random.normal(next(keys), (H, W, ci), jnp.float32))
        betas.append(0.1 * jax.random.normal(next(keys), (H, W, ci), jnp.float32))
        conv_ws.append(jax.random.normal(next(keys), (3, 3, ci, co), jnp.float32)
                       * (1.0 / (9 * ci) ** 0.5))
    g_last = 1.0 + 0.1 * jax.random.normal(next(keys), (H, W, Cl), jnp.float32)
    b_last = 0.1 * jax.random.normal(next(keys), (H, W, Cl), jnp.float32)
    fc1_w = jax.random.normal(next(keys), (Cl, 2 * Cl), jnp.float32) * (1.0 / Cl ** 0.5)
    fc2_w = jax.random.normal(next(keys), (2 * Cl + C0, Cl), jnp.float32) \
        * (1.0 / (2 * Cl + C0) ** 0.5)
    params = (gammas, betas, conv_ws, g_last, b_last, fc1_w, fc2_w)

    x = jax.random.normal(next(keys), (N, C0, H, W), jnp.float32)   # NCHW like PyTorch

    # Default: batch-fused single grid step (v5e/v6e); also check the
    # per-sample grid=(N,) 'parallel' path recommended for v7x megacore.
    out_fused = jax.block_until_ready(cnn3x3_forward(x, params, channels))
    out_grid = jax.block_until_ready(
        cnn3x3_forward(x, params, channels, fuse_batch=False))
    ref = reference_forward(x, params, channels)

    assert out_fused.shape == (N, Cl, H, W), out_fused.shape
    err_fused = float(jnp.max(jnp.abs(out_fused - ref)))
    err_grid = float(jnp.max(jnp.abs(out_grid - ref)))
    if err_fused > 1e-3 or err_grid > 1e-3:
        raise AssertionError(
            f"mismatch vs reference: fused={err_fused}, grid={err_grid}")
    print("KERNEL_OK")
</pallas_src>

<mosaic_0001>
module attributes {stable_mosaic.version = 11 : i64} {
  func.func @_cnn3x3_kernel(%arg0: i32, %arg1: memref<2x16x128xf32, #tpu.memory_space<vmem>>, %arg2: memref<16x128xf32, #tpu.memory_space<vmem>>, %arg3: memref<16x128xf32, #tpu.memory_space<vmem>>, %arg4: memref<384x128xf32, #tpu.memory_space<vmem>>, %arg5: memref<16x128xf32, #tpu.memory_space<vmem>>, %arg6: memref<16x128xf32, #tpu.memory_space<vmem>>, %arg7: memref<384x128xf32, #tpu.memory_space<vmem>>, %arg8: memref<16x128xf32, #tpu.memory_space<vmem>>, %arg9: memref<16x128xf32, #tpu.memory_space<vmem>>, %arg10: memref<128x256xf32, #tpu.memory_space<vmem>>, %arg11: memref<256x128xf32, #tpu.memory_space<vmem>>, %arg12: memref<128x128xf32, #tpu.memory_space<vmem>>, %arg13: memref<2x16x128xf32, #tpu.memory_space<vmem>>) attributes {dimension_semantics = [#tpu.dimension_semantics<arbitrary>], iteration_bounds = array<i64: 1>, scalar_prefetch = 0 : i64, scratch_operands = 0 : i64, tpu.core_type = #tpu.core_type<tc>, window_params = [{pipeline_mode = #tpu.pipeline_mode<synchronous>, transform_indices = @transform_0, window_bounds = array<i64: 2, 16, 128>}, {pipeline_mode = #tpu.pipeline_mode<synchronous>, transform_indices = @transform_1, window_bounds = array<i64: 16, 128>}, {pipeline_mode = #tpu.pipeline_mode<synchronous>, transform_indices = @transform_2, window_bounds = array<i64: 16, 128>}, {pipeline_mode = #tpu.pipeline_mode<synchronous>, transform_indices = @transform_3, window_bounds = array<i64: 384, 128>}, {pipeline_mode = #tpu.pipeline_mode<synchronous>, transform_indices = @transform_4, window_bounds = array<i64: 16, 128>}, {pipeline_mode = #tpu.pipeline_mode<synchronous>, transform_indices = @transform_5, window_bounds = array<i64: 16, 128>}, {pipeline_mode = #tpu.pipeline_mode<synchronous>, transform_indices = @transform_6, window_bounds = array<i64: 384, 128>}, {pipeline_mode = #tpu.pipeline_mode<synchronous>, transform_indices = @transform_7, window_bounds = array<i64: 16, 128>}, {pipeline_mode = #tpu.pipeline_mode<synchronous>, transform_indices = @transform_8, window_bounds = array<i64: 16, 128>}, {pipeline_mode = #tpu.pipeline_mode<synchronous>, transform_indices = @transform_9, window_bounds = array<i64: 128, 256>}, {pipeline_mode = #tpu.pipeline_mode<synchronous>, transform_indices = @transform_10, window_bounds = array<i64: 256, 128>}, {pipeline_mode = #tpu.pipeline_mode<synchronous>, transform_indices = @transform_11, window_bounds = array<i64: 128, 128>}, {pipeline_mode = #tpu.pipeline_mode<synchronous>, transform_indices = @transform_12, window_bounds = array<i64: 2, 16, 128>}]} {
    %c0 = arith.constant 0 : index
    %c0_0 = arith.constant 0 : index
    %c0_1 = arith.constant 0 : index
    %0 = vector.load %arg1[%c0, %c0_0, %c0_1] : memref<2x16x128xf32, #tpu.memory_space<vmem>>, vector<2x16x128xf32>
    %1 = vector.shape_cast %0 : vector<2x16x128xf32> to vector<32x128xf32>
    %c0_2 = arith.constant 0 : index
    %c0_3 = arith.constant 0 : index
    %2 = vector.load %arg2[%c0_2, %c0_3] : memref<16x128xf32, #tpu.memory_space<vmem>>, vector<16x128xf32>
    %c0_4 = arith.constant 0 : index
    %c0_5 = arith.constant 0 : index
    %3 = vector.load %arg3[%c0_4, %c0_5] : memref<16x128xf32, #tpu.memory_space<vmem>>, vector<16x128xf32>
    %c0_6 = arith.constant 0 : index
    %c0_7 = arith.constant 0 : index
    %4 = vector.load %arg4[%c0_6, %c0_7] : memref<384x128xf32, #tpu.memory_space<vmem>>, vector<384x128xf32>
    %5 = vector.shape_cast %1 : vector<32x128xf32> to vector<2x16x128xf32>
    %cst = arith.constant dense<0.000000e+00> : vector<2x16xf32>
    %6 = vector.multi_reduction <add>, %5, %cst [2] : vector<2x16x128xf32> to vector<2x16xf32>
    %7 = vector.shape_cast %6 : vector<2x16xf32> to vector<2x16x1xf32>
    %cst_8 = arith.constant dense<0.000000e+00> : vector<2x1xf32>
    %8 = vector.multi_reduction <add>, %7, %cst_8 [1] : vector<2x16x1xf32> to vector<2x1xf32>
    %9 = vector.shape_cast %8 : vector<2x1xf32> to vector<2x1x1xf32>
    %cst_9 = arith.constant 9.765625E-4 : f32
    %10 = vector.broadcast %cst_9 : f32 to vector<2x1x1xf32>
    %11 = arith.mulf %9, %10 : vector<2x1x1xf32>
    %12 = vector.broadcast %11 : vector<2x1x1xf32> to vector<2x16x128xf32>
    %13 = arith.subf %5, %12 : vector<2x16x128xf32>
    %14 = arith.mulf %5, %5 : vector<2x16x128xf32>
    %cst_10 = arith.constant dense<0.000000e+00> : vector<2x16xf32>
    %15 = vector.multi_reduction <add>, %14, %cst_10 [2] : vector<2x16x128xf32> to vector<2x16xf32>
    %16 = vector.shape_cast %15 : vector<2x16xf32> to vector<2x16x1xf32>
    %cst_11 = arith.constant dense<0.000000e+00> : vector<2x1xf32>
    %17 = vector.multi_reduction <add>, %16, %cst_11 [1] : vector<2x16x1xf32> to vector<2x1xf32>
    %18 = vector.shape_cast %17 : vector<2x1xf32> to vector<2x1x1xf32>
    %cst_12 = arith.constant 9.765625E-4 : f32
    %19 = vector.broadcast %cst_12 : f32 to vector<2x1x1xf32>
    %20 = arith.mulf %18, %19 : vector<2x1x1xf32>
    %21 = arith.mulf %11, %11 : vector<2x1x1xf32>
    %22 = arith.subf %20, %21 : vector<2x1x1xf32>
    %cst_13 = arith.constant 9.99999974E-6 : f32
    %23 = vector.broadcast %cst_13 : f32 to vector<2x1x1xf32>
    %24 = arith.addf %22, %23 : vector<2x1x1xf32>
    %25 = math.rsqrt %24 : vector<2x1x1xf32>
    %26 = vector.broadcast %25 : vector<2x1x1xf32> to vector<2x16x128xf32>
    %27 = arith.mulf %13, %26 : vector<2x16x128xf32>
    %28 = vector.shape_cast %2 : vector<16x128xf32> to vector<1x16x128xf32>
    %29 = vector.broadcast %28 : vector<1x16x128xf32> to vector<2x16x128xf32>
    %30 = arith.mulf %27, %29 : vector<2x16x128xf32>
    %31 = vector.shape_cast %3 : vector<16x128xf32> to vector<1x16x128xf32>
    %32 = vector.broadcast %31 : vector<1x16x128xf32> to vector<2x16x128xf32>
    %33 = arith.addf %30, %32 : vector<2x16x128xf32>
    %34 = vector.shape_cast %33 : vector<2x16x128xf32> to vector<32x128xf32>
    %35 = vector.shape_cast %34 : vector<32x128xf32> to vector<2x16x128xf32>
    %cst_14 = arith.constant 0.000000e+00 : f32
    %36 = vector.broadcast %cst_14 : f32 to vector<2x1x128xf32>
    %37 = vector.extract_strided_slice %35 {offsets = [0, 0, 0], sizes = [2, 15, 128], strides = [1, 1, 1]} : vector<2x16x128xf32> to vector<2x15x128xf32>
    %38 = tpu.concatenate %36, %37 in 1 : vector<2x1x128xf32>, vector<2x15x128xf32> -> vector<2x16x128xf32>
    %39 = vector.shape_cast %38 : vector<2x16x128xf32> to vector<32x128xf32>
    %40 = vector.extract_strided_slice %35 {offsets = [0, 1, 0], sizes = [2, 15, 128], strides = [1, 1, 1]} : vector<2x16x128xf32> to vector<2x15x128xf32>
    %41 = tpu.concatenate %40, %36 in 1 : vector<2x15x128xf32>, vector<2x1x128xf32> -> vector<2x16x128xf32>
    %42 = vector.shape_cast %41 : vector<2x16x128xf32> to vector<32x128xf32>
    %43 = tpu.concatenate %39, %34, %42 in 1 : vector<32x128xf32>, vector<32x128xf32>, vector<32x128xf32> -> vector<32x384xf32>
    %cst_15 = arith.constant dense<0.000000e+00> : vector<32x128xf32>
    %44 = tpu.matmul %43, %4, %cst_15 {dimension_numbers = #tpu.dot_dimension_numbers<[1], [0], [0], [1], [0, 0, 1, 1], [], []>} : vector<32x384xf32>, vector<384x128xf32>, vector<32x128xf32> -> vector<32x128xf32>
    %cst_16 = arith.constant 2.000000e+01 : f32
    %45 = vector.broadcast %cst_16 : f32 to vector<32x128xf32>
    %46 = arith.cmpf ogt, %44, %45 : vector<32x128xf32>
    %cst_17 = arith.constant 2.000000e+01 : f32
    %47 = vector.broadcast %cst_17 : f32 to vector<32x128xf32>
    %48 = arith.minimumf %44, %47 : vector<32x128xf32>
    %49 = math.exp %48 : vector<32x128xf32>
    %50 = math.log1p %49 : vector<32x128xf32>
    %51 = arith.select %46, %44, %50 : vector<32x128xi1>, vector<32x128xf32>
    %c0_18 = arith.constant 0 : index
    %c0_19 = arith.constant 0 : index
    %52 = vector.load %arg5[%c0_18, %c0_19] : memref<16x128xf32, #tpu.memory_space<vmem>>, vector<16x128xf32>
    %c0_20 = arith.constant 0 : index
    %c0_21 = arith.constant 0 : index
    %53 = vector.load %arg6[%c0_20, %c0_21] : memref<16x128xf32, #tpu.memory_space<vmem>>, vector<16x128xf32>
    %c0_22 = arith.constant 0 : index
    %c0_23 = arith.constant 0 : index
    %54 = vector.load %arg7[%c0_22, %c0_23] : memref<384x128xf32, #tpu.memory_space<vmem>>, vector<384x128xf32>
    %55 = vector.shape_cast %51 : vector<32x128xf32> to vector<2x16x128xf32>
    %cst_24 = arith.constant dense<0.000000e+00> : vector<2x16xf32>
    %56 = vector.multi_reduction <add>, %55, %cst_24 [2] : vector<2x16x128xf32> to vector<2x16xf32>
    %57 = vector.shape_cast %56 : vector<2x16xf32> to vector<2x16x1xf32>
    %cst_25 = arith.constant dense<0.000000e+00> : vector<2x1xf32>
    %58 = vector.multi_reduction <add>, %57, %cst_25 [1] : vector<2x16x1xf32> to vector<2x1xf32>
    %59 = vector.shape_cast %58 : vector<2x1xf32> to vector<2x1x1xf32>
    %cst_26 = arith.constant 4.8828125E-4 : f32
    %60 = vector.broadcast %cst_26 : f32 to vector<2x1x1xf32>
    %61 = arith.mulf %59, %60 : vector<2x1x1xf32>
    %62 = vector.broadcast %61 : vector<2x1x1xf32> to vector<2x16x128xf32>
    %63 = arith.subf %55, %62 : vector<2x16x128xf32>
    %64 = arith.mulf %63, %63 : vector<2x16x128xf32>
    %cst_27 = arith.constant dense<0.000000e+00> : vector<2x16xf32>
    %65 = vector.multi_reduction <add>, %64, %cst_27 [2] : vector<2x16x128xf32> to vector<2x16xf32>
    %66 = vector.shape_cast %65 : vector<2x16xf32> to vector<2x16x1xf32>
    %cst_28 = arith.constant dense<0.000000e+00> : vector<2x1xf32>
    %67 = vector.multi_reduction <add>, %66, %cst_28 [1] : vector<2x16x1xf32> to vector<2x1xf32>
    %68 = vector.shape_cast %67 : vector<2x1xf32> to vector<2x1x1xf32>
    %cst_29 = arith.constant 4.8828125E-4 : f32
    %69 = vector.broadcast %cst_29 : f32 to vector<2x1x1xf32>
    %70 = arith.mulf %68, %69 : vector<2x1x1xf32>
    %cst_30 = arith.constant 9.99999974E-6 : f32
    %71 = vector.broadcast %cst_30 : f32 to vector<2x1x1xf32>
    %72 = arith.addf %70, %71 : vector<2x1x1xf32>
    %73 = math.rsqrt %72 : vector<2x1x1xf32>
    %74 = vector.broadcast %73 : vector<2x1x1xf32> to vector<2x16x128xf32>
    %75 = arith.mulf %63, %74 : vector<2x16x128xf32>
    %76 = vector.shape_cast %52 : vector<16x128xf32> to vector<1x16x128xf32>
    %77 = vector.broadcast %76 : vector<1x16x128xf32> to vector<2x16x128xf32>
    %78 = arith.mulf %75, %77 : vector<2x16x128xf32>
    %79 = vector.shape_cast %53 : vector<16x128xf32> to vector<1x16x128xf32>
    %80 = vector.broadcast %79 : vector<1x16x128xf32> to vector<2x16x128xf32>
    %81 = arith.addf %78, %80 : vector<2x16x128xf32>
    %82 = vector.shape_cast %81 : vector<2x16x128xf32> to vector<32x128xf32>
    %83 = vector.shape_cast %82 : vector<32x128xf32> to vector<2x16x128xf32>
    %cst_31 = arith.constant 0.000000e+00 : f32
    %84 = vector.broadcast %cst_31 : f32 to vector<2x1x128xf32>
    %85 = vector.extract_strided_slice %83 {offsets = [0, 0, 0], sizes = [2, 15, 128], strides = [1, 1, 1]} : vector<2x16x128xf32> to vector<2x15x128xf32>
    %86 = tpu.concatenate %84, %85 in 1 : vector<2x1x128xf32>, vector<2x15x128xf32> -> vector<2x16x128xf32>
    %87 = vector.shape_cast %86 : vector<2x16x128xf32> to vector<32x128xf32>
    %88 = vector.extract_strided_slice %83 {offsets = [0, 1, 0], sizes = [2, 15, 128], strides = [1, 1, 1]} : vector<2x16x128xf32> to vector<2x15x128xf32>
    %89 = tpu.concatenate %88, %84 in 1 : vector<2x15x128xf32>, vector<2x1x128xf32> -> vector<2x16x128xf32>
    %90 = vector.shape_cast %89 : vector<2x16x128xf32> to vector<32x128xf32>
    %91 = tpu.concatenate %87, %82, %90 in 1 : vector<32x128xf32>, vector<32x128xf32>, vector<32x128xf32> -> vector<32x384xf32>
    %cst_32 = arith.constant dense<0.000000e+00> : vector<32x128xf32>
    %92 = tpu.matmul %91, %54, %cst_32 {dimension_numbers = #tpu.dot_dimension_numbers<[1], [0], [0], [1], [0, 0, 1, 1], [], []>} : vector<32x384xf32>, vector<384x128xf32>, vector<32x128xf32> -> vector<32x128xf32>
    %cst_33 = arith.constant 2.000000e+01 : f32
    %93 = vector.broadcast %cst_33 : f32 to vector<32x128xf32>
    %94 = arith.cmpf ogt, %92, %93 : vector<32x128xf32>
    %cst_34 = arith.constant 2.000000e+01 : f32
    %95 = vector.broadcast %cst_34 : f32 to vector<32x128xf32>
    %96 = arith.minimumf %92, %95 : vector<32x128xf32>
    %97 = math.exp %96 : vector<32x128xf32>
    %98 = math.log1p %97 : vector<32x128xf32>
    %99 = arith.select %94, %92, %98 : vector<32x128xi1>, vector<32x128xf32>
    %c0_35 = arith.constant 0 : index
    %c0_36 = arith.constant 0 : index
    %100 = vector.load %arg8[%c0_35, %c0_36] : memref<16x128xf32, #tpu.memory_space<vmem>>, vector<16x128xf32>
    %c0_37 = arith.constant 0 : index
    %c0_38 = arith.constant 0 : index
    %101 = vector.load %arg9[%c0_37, %c0_38] : memref<16x128xf32, #tpu.memory_space<vmem>>, vector<16x128xf32>
    %c0_39 = arith.constant 0 : index
    %c0_40 = arith.constant 0 : index
    %102 = vector.load %arg10[%c0_39, %c0_40] : memref<128x256xf32, #tpu.memory_space<vmem>>, vector<128x256xf32>
    %c0_41 = arith.constant 0 : index
    %c0_42 = arith.constant 0 : index
    %103 = vector.load %arg11[%c0_41, %c0_42] : memref<256x128xf32, #tpu.memory_space<vmem>>, vector<256x128xf32>
    %c0_43 = arith.constant 0 : index
    %c0_44 = arith.constant 0 : index
    %104 = vector.load %arg12[%c0_43, %c0_44] : memref<128x128xf32, #tpu.memory_space<vmem>>, vector<128x128xf32>
    %105 = vector.shape_cast %99 : vector<32x128xf32> to vector<2x16x128xf32>
    %cst_45 = arith.constant dense<0.000000e+00> : vector<2x16xf32>
    %106 = vector.multi_reduction <add>, %105, %cst_45 [2] : vector<2x16x128xf32> to vector<2x16xf32>
    %107 = vector.shape_cast %106 : vector<2x16xf32> to vector<2x16x1xf32>
    %cst_46 = arith.constant dense<0.000000e+00> : vector<2x1xf32>
    %108 = vector.multi_reduction <add>, %107, %cst_46 [1] : vector<2x16x1xf32> to vector<2x1xf32>
    %109 = vector.shape_cast %108 : vector<2x1xf32> to vector<2x1x1xf32>
    %cst_47 = arith.constant 4.8828125E-4 : f32
    %110 = vector.broadcast %cst_47 : f32 to vector<2x1x1xf32>
    %111 = arith.mulf %109, %110 : vector<2x1x1xf32>
    %112 = vector.broadcast %111 : vector<2x1x1xf32> to vector<2x16x128xf32>
    %113 = arith.subf %105, %112 : vector<2x16x128xf32>
    %114 = arith.mulf %113, %113 : vector<2x16x128xf32>
    %cst_48 = arith.constant dense<0.000000e+00> : vector<2x16xf32>
    %115 = vector.multi_reduction <add>, %114, %cst_48 [2] : vector<2x16x128xf32> to vector<2x16xf32>
    %116 = vector.shape_cast %115 : vector<2x16xf32> to vector<2x16x1xf32>
    %cst_49 = arith.constant dense<0.000000e+00> : vector<2x1xf32>
    %117 = vector.multi_reduction <add>, %116, %cst_49 [1] : vector<2x16x1xf32> to vector<2x1xf32>
    %118 = vector.shape_cast %117 : vector<2x1xf32> to vector<2x1x1xf32>
    %cst_50 = arith.constant 4.8828125E-4 : f32
    %119 = vector.broadcast %cst_50 : f32 to vector<2x1x1xf32>
    %120 = arith.mulf %118, %119 : vector<2x1x1xf32>
    %cst_51 = arith.constant 9.99999974E-6 : f32
    %121 = vector.broadcast %cst_51 : f32 to vector<2x1x1xf32>
    %122 = arith.addf %120, %121 : vector<2x1x1xf32>
    %123 = math.rsqrt %122 : vector<2x1x1xf32>
    %124 = vector.broadcast %123 : vector<2x1x1xf32> to vector<2x16x128xf32>
    %125 = arith.mulf %113, %124 : vector<2x16x128xf32>
    %126 = vector.shape_cast %100 : vector<16x128xf32> to vector<1x16x128xf32>
    %127 = vector.broadcast %126 : vector<1x16x128xf32> to vector<2x16x128xf32>
    %128 = arith.mulf %125, %127 : vector<2x16x128xf32>
    %129 = vector.shape_cast %101 : vector<16x128xf32> to vector<1x16x128xf32>
    %130 = vector.broadcast %129 : vector<1x16x128xf32> to vector<2x16x128xf32>
    %131 = arith.addf %128, %130 : vector<2x16x128xf32>
    %132 = vector.shape_cast %131 : vector<2x16x128xf32> to vector<32x128xf32>
    %cst_52 = arith.constant dense<0.000000e+00> : vector<32x256xf32>
    %133 = tpu.matmul %132, %102, %cst_52 {dimension_numbers = #tpu.dot_dimension_numbers<[1], [0], [0], [1], [0, 0, 1, 1], [], []>} : vector<32x128xf32>, vector<128x256xf32>, vector<32x256xf32> -> vector<32x256xf32>
    %cst_53 = arith.constant 2.000000e+01 : f32
    %134 = vector.broadcast %cst_53 : f32 to vector<32x256xf32>
    %135 = arith.cmpf ogt, %133, %134 : vector<32x256xf32>
    %cst_54 = arith.constant 2.000000e+01 : f32
    %136 = vector.broadcast %cst_54 : f32 to vector<32x256xf32>
    %137 = arith.minimumf %133, %136 : vector<32x256xf32>
    %138 = math.exp %137 : vector<32x256xf32>
    %139 = math.log1p %138 : vector<32x256xf32>
    %140 = arith.select %135, %133, %139 : vector<32x256xi1>, vector<32x256xf32>
    %cst_55 = arith.constant dense<0.000000e+00> : vector<32x128xf32>
    %141 = tpu.matmul %140, %103, %cst_55 {dimension_numbers = #tpu.dot_dimension_numbers<[1], [0], [0], [1], [0, 0, 1, 1], [], []>} : vector<32x256xf32>, vector<256x128xf32>, vector<32x128xf32> -> vector<32x128xf32>
    %cst_56 = arith.constant dense<0.000000e+00> : vector<32x128xf32>
    %142 = tpu.matmul %1, %104, %cst_56 {dimension_numbers = #tpu.dot_dimension_numbers<[1], [0], [0], [1], [0, 0, 1, 1], [], []>} : vector<32x128xf32>, vector<128x128xf32>, vector<32x128xf32> -> vector<32x128xf32>
    %143 = arith.addf %141, %142 : vector<32x128xf32>
    %144 = vector.shape_cast %143 : vector<32x128xf32> to vector<2x16x128xf32>
    %c0_57 = arith.constant 0 : index
    %c0_58 = arith.constant 0 : index
    %c0_59 = arith.constant 0 : index
    %145 = vector.load %arg13[%c0_57, %c0_58, %c0_59] : memref<2x16x128xf32, #tpu.memory_space<vmem>>, vector<2x16x128xf32>
    tpu.vector_store %arg13[%c0_57, %c0_58, %c0_59], %144 {strides = array<i32>} : memref<2x16x128xf32, #tpu.memory_space<vmem>>, vector<2x16x128xf32>,
    return
  }
  func.func @transform_0(%arg0: i32) -> (i32, i32, i32) {
    %c0_i32 = arith.constant 0 : i32
    %c0_i32_0 = arith.constant 0 : i32
    %c0_i32_1 = arith.constant 0 : i32
    %c0_i32_2 = arith.constant 0 : i32
    return %c0_i32, %c0_i32_0, %c0_i32_1 : i32, i32, i32
  }
  func.func @transform_1(%arg0: i32) -> (i32, i32) {
    %c0_i32 = arith.constant 0 : i32
    %c0_i32_0 = arith.constant 0 : i32
    %c0_i32_1 = arith.constant 0 : i32
    return %c0_i32, %c0_i32_0 : i32, i32
  }
  func.func @transform_2(%arg0: i32) -> (i32, i32) {
    %c0_i32 = arith.constant 0 : i32
    %c0_i32_0 = arith.constant 0 : i32
    %c0_i32_1 = arith.constant 0 : i32
    return %c0_i32, %c0_i32_0 : i32, i32
  }
  func.func @transform_3(%arg0: i32) -> (i32, i32) {
    %c0_i32 = arith.constant 0 : i32
    %c0_i32_0 = arith.constant 0 : i32
    %c0_i32_1 = arith.constant 0 : i32
    return %c0_i32, %c0_i32_0 : i32, i32
  }
  func.func @transform_4(%arg0: i32) -> (i32, i32) {
    %c0_i32 = arith.constant 0 : i32
    %c0_i32_0 = arith.constant 0 : i32
    %c0_i32_1 = arith.constant 0 : i32
    return %c0_i32, %c0_i32_0 : i32, i32
  }
  func.func @transform_5(%arg0: i32) -> (i32, i32) {
    %c0_i32 = arith.constant 0 : i32
    %c0_i32_0 = arith.constant 0 : i32
    %c0_i32_1 = arith.constant 0 : i32
    return %c0_i32, %c0_i32_0 : i32, i32
  }
  func.func @transform_6(%arg0: i32) -> (i32, i32) {
    %c0_i32 = arith.constant 0 : i32
    %c0_i32_0 = arith.constant 0 : i32
    %c0_i32_1 = arith.constant 0 : i32
    return %c0_i32, %c0_i32_0 : i32, i32
  }
  func.func @transform_7(%arg0: i32) -> (i32, i32) {
    %c0_i32 = arith.constant 0 : i32
    %c0_i32_0 = arith.constant 0 : i32
    %c0_i32_1 = arith.constant 0 : i32
    return %c0_i32, %c0_i32_0 : i32, i32
  }
  func.func @transform_8(%arg0: i32) -> (i32, i32) {
    %c0_i32 = arith.constant 0 : i32
    %c0_i32_0 = arith.constant 0 : i32
    %c0_i32_1 = arith.constant 0 : i32
    return %c0_i32, %c0_i32_0 : i32, i32
  }
  func.func @transform_9(%arg0: i32) -> (i32, i32) {
    %c0_i32 = arith.constant 0 : i32
    %c0_i32_0 = arith.constant 0 : i32
    %c0_i32_1 = arith.constant 0 : i32
    return %c0_i32, %c0_i32_0 : i32, i32
  }
  func.func @transform_10(%arg0: i32) -> (i32, i32) {
    %c0_i32 = arith.constant 0 : i32
    %c0_i32_0 = arith.constant 0 : i32
    %c0_i32_1 = arith.constant 0 : i32
    return %c0_i32, %c0_i32_0 : i32, i32
  }
  func.func @transform_11(%arg0: i32) -> (i32, i32) {
    %c0_i32 = arith.constant 0 : i32
    %c0_i32_0 = arith.constant 0 : i32
    %c0_i32_1 = arith.constant 0 : i32
    return %c0_i32, %c0_i32_0 : i32, i32
  }
  func.func @transform_12(%arg0: i32) -> (i32, i32, i32) {
    %c0_i32 = arith.constant 0 : i32
    %c0_i32_0 = arith.constant 0 : i32
    %c0_i32_1 = arith.constant 0 : i32
    %c0_i32_2 = arith.constant 0 : i32
    return %c0_i32, %c0_i32_0, %c0_i32_1 : i32, i32, i32
  }
}

</mosaic_0001>

<llo_original>
// kernel: tpu_custom_call.1
$region0: #{tpu_custom_call.1}
  #allocation0 [shape = 'u32[]', space=smem, size = 0x4, offset = 0x4, fixed_abs, tag = 'smem constant byte address 0x4 - core index']
  #allocation1 [shape = 'u32[72,128]{1,0:T(1,128)}', space=vmem, size = 0x9000, scoped, tag = 'internal scratch']
  %s0 = inlined_call_operand.hbm [shape: f32[2,16,128], index: 0, kind: input, shape index: {}]
  %s1 = inlined_call_operand.hbm [shape: f32[16,128], index: 1, kind: input, shape index: {}]
  %s2 = inlined_call_operand.hbm [shape: f32[16,128], index: 2, kind: input, shape index: {}]
  %s3 = inlined_call_operand.hbm [shape: f32[384,128], index: 3, kind: input, shape index: {}]
  %s4 = inlined_call_operand.hbm [shape: f32[16,128], index: 4, kind: input, shape index: {}]
  %s5 = inlined_call_operand.hbm [shape: f32[16,128], index: 5, kind: input, shape index: {}]
  %s6 = inlined_call_operand.hbm [shape: f32[384,128], index: 6, kind: input, shape index: {}]
  %s7 = inlined_call_operand.hbm [shape: f32[16,128], index: 7, kind: input, shape index: {}]
  %s8 = inlined_call_operand.hbm [shape: f32[16,128], index: 8, kind: input, shape index: {}]
  %s9 = inlined_call_operand.hbm [shape: f32[128,256], index: 9, kind: input, shape index: {}]
  %s10 = inlined_call_operand.hbm [shape: f32[256,128], index: 10, kind: input, shape index: {}]
  %s11 = inlined_call_operand.hbm [shape: f32[128,128], index: 11, kind: input, shape index: {}]
  %s12 = inlined_call_operand.hbm [shape: f32[2,16,128], index: 12, kind: output, shape index: {}]
  %s13 = sld [smem:[#allocation0]]
  $region106: #{tpu_custom_call.1} parent=0
    _
  %s15 = ssub.s32 1, %s13
  %s16 = scalar_select 0, %s15, %s13
  $region1: #{tpu_custom_call.1} parent=0
    #allocation2 [shape = 'u8[16384]{0}', space=vmem, size = 0x4000, scoped, tag = 'input window, operand 0, single buffered']
    #allocation3 [shape = 's32[1]{0}', space=sflag, size = 0x4, scoped, tag = 'scoped memory for tpu_custom_call.1']
    #allocation4 [shape = 's32[1]{0}', space=sflag, size = 0x4, scoped, tag = 'scoped memory for tpu_custom_call.1']
    #allocation5 [shape = 'u8[8192]{0}', space=vmem, size = 0x2000, scoped, tag = 'input window, operand 1, single buffered']
    #allocation6 [shape = 's32[1]{0}', space=sflag, size = 0x4, scoped, tag = 'scoped memory for tpu_custom_call.1']
    #allocation7 [shape = 'u8[8192]{0}', space=vmem, size = 0x2000, scoped, tag = 'input window, operand 2, single buffered']
    #allocation8 [shape = 'u8[196608]{0}', space=vmem, size = 0x30000, scoped, tag = 'input window, operand 3, single buffered']
    #allocation9 [shape = 's32[1]{0}', space=sflag, size = 0x4, scoped, tag = 'scoped memory for tpu_custom_call.1']
    #allocation10 [shape = 'u8[8192]{0}', space=vmem, size = 0x2000, scoped, tag = 'input window, operand 4, single buffered']
    #allocation11 [shape = 'u8[8192]{0}', space=vmem, size = 0x2000, scoped, tag = 'input window, operand 5, single buffered']
    #allocation12 [shape = 's32[1]{0}', space=sflag, size = 0x4, scoped, tag = 'scoped memory for tpu_custom_call.1']
    #allocation13 [shape = 'u8[196608]{0}', space=vmem, size = 0x30000, scoped, tag = 'input window, operand 6, single buffered']
    #allocation14 [shape = 'u8[8192]{0}', space=vmem, size = 0x2000, scoped, tag = 'input window, operand 7, single buffered']
    #allocation15 [shape = 's32[1]{0}', space=sflag, size = 0x4, scoped, tag = 'scoped memory for tpu_custom_call.1']
    #allocation16 [shape = 'u8[8192]{0}', space=vmem, size = 0x2000, scoped, tag = 'input window, operand 8, single buffered']
    #allocation17 [shape = 'u8[131072]{0}', space=vmem, size = 0x20000, scoped, tag = 'input window, operand 9, single buffered']
    #allocation18 [shape = 's32[1]{0}', space=sflag, size = 0x4, scoped, tag = 'scoped memory for tpu_custom_call.1']
    #allocation19 [shape = 'u8[131072]{0}', space=vmem, size = 0x20000, scoped, tag = 'input window, operand 10, single buffered']
    #allocation20 [shape = 'u8[65536]{0}', space=vmem, size = 0x10000, scoped, tag = 'input window, operand 11, single buffered']
    #allocation21 [shape = 's32[1]{0}', space=sflag, size = 0x4, scoped, tag = 'scoped memory for tpu_custom_call.1']
    #allocation22 [shape = 'u8[16384]{0}', space=vmem, size = 0x4000, scoped, tag = 'output window, operand 0, single buffered']
    %17 = vsyncpa [#allocation3], 0
    %18 = vsyncpa [#allocation6], 0
    %19 = vsyncpa [#allocation9], 0
    %20 = vsyncpa [#allocation12], 0
    %21 = vsyncpa [#allocation15], 0
    %22 = vsyncpa [#allocation18], 0
    %23 = vsyncpa [#allocation21], 0
    %24 = vsyncpa [#allocation4], 0
    // Predicated region
    $region2: #{tpu_custom_call.1} parent=1 // pred_check
      _
    $region3: #{tpu_custom_call.1} parent=1 // pred_check_branch
      %26 = sbr.rel (0) target = $region5
    $region4: #{tpu_custom_call.1} parent=1 // pred_region
      %28 = vsyncadd [#allocation3], 0
      %s29 = sshll.u32 %s0, 4
      %s30 = int_to_ptr.hbm [resolvable:$true] %s29
      %s31 = sshll.u32 [#allocation2], 4
      %s32 = int_to_ptr.vmem [resolvable:$true] %s31
      %37 = dma.hbm_to_vmem [thread:$0]  %s30, 512, %s32, [#allocation3], 128, 128, 8
    $region5: #{tpu_custom_call.1} parent=1 // pred_fallthru
      _
    // Predicated region
    $region6: #{tpu_custom_call.1} parent=1 // pred_check
      _
    $region7: #{tpu_custom_call.1} parent=1 // pred_check_branch
      %39 = sbr.rel (0) target = $region9
    $region8: #{tpu_custom_call.1} parent=1 // pred_region
      %41 = vsyncadd [#allocation6], 0
      %s42 = sshll.u32 %s1, 4
      %s43 = int_to_ptr.hbm [resolvable:$true] %s42
      %s44 = sshll.u32 [#allocation5], 4
      %s45 = int_to_ptr.vmem [resolvable:$true] %s44
      %50 = dma.hbm_to_vmem [thread:$0]  %s43, 256, %s45, [#allocation6], 128, 128, 8
    $region9: #{tpu_custom_call.1} parent=1 // pred_fallthru
      _
    // Predicated region
    $region10: #{tpu_custom_call.1} parent=1 // pred_check
      _
    $region11: #{tpu_custom_call.1} parent=1 // pred_check_branch
      %52 = sbr.rel (0) target = $region13
    $region12: #{tpu_custom_call.1} parent=1 // pred_region
      %54 = vsyncadd [#allocation6], 0
      %s55 = sshll.u32 %s2, 4
      %s56 = int_to_ptr.hbm [resolvable:$true] %s55
      %s57 = sshll.u32 [#allocation7], 4
      %s58 = int_to_ptr.vmem [resolvable:$true] %s57
      %63 = dma.hbm_to_vmem [thread:$0]  %s56, 256, %s58, [#allocation6], 128, 128, 8
    $region13: #{tpu_custom_call.1} parent=1 // pred_fallthru
      _
    // Predicated region
    $region14: #{tpu_custom_call.1} parent=1 // pred_check
      _
    $region15: #{tpu_custom_call.1} parent=1 // pred_check_branch
      %65 = sbr.rel (0) target = $region17
    $region16: #{tpu_custom_call.1} parent=1 // pred_region
      %67 = vsyncadd [#allocation9], 0
      %s68 = sshll.u32 %s3, 4
      %s69 = int_to_ptr.hbm [resolvable:$true] %s68
      %s70 = sshll.u32 [#allocation8], 4
      %s71 = int_to_ptr.vmem [resolvable:$true] %s70
      %76 = dma.hbm_to_vmem [thread:$0]  %s69, 6144, %s71, [#allocation9], 128, 128, 8
    $region17: #{tpu_custom_call.1} parent=1 // pred_fallthru
      _
    // Predicated region
    $region18: #{tpu_custom_call.1} parent=1 // pred_check
      _
    $region19: #{tpu_custom_call.1} parent=1 // pred_check_branch
      %78 = sbr.rel (0) target = $region21
    $region20: #{tpu_custom_call.1} parent=1 // pred_region
      %80 = vsyncadd [#allocation9], 0
      %s81 = sshll.u32 %s4, 4
      %s82 = int_to_ptr.hbm [resolvable:$true] %s81
      %s83 = sshll.u32 [#allocation10], 4
      %s84 = int_to_ptr.vmem [resolvable:$true] %s83
      %89 = dma.hbm_to_vmem [thread:$0]  %s82, 256, %s84, [#allocation9], 128, 128, 8
    $region21: #{tpu_custom_call.1} parent=1 // pred_fallthru
      _
    // Predicated region
    $region22: #{tpu_custom_call.1} parent=1 // pred_check
      _
    $region23: #{tpu_custom_call.1} parent=1 // pred_check_branch
      %91 = sbr.rel (0) target = $region25
    $region24: #{tpu_custom_call.1} parent=1 // pred_region
      %93 = vsyncadd [#allocation12], 0
      %s94 = sshll.u32 %s5, 4
      %s95 = int_to_ptr.hbm [resolvable:$true] %s94
      %s96 = sshll.u32 [#allocation11], 4
      %s97 = int_to_ptr.vmem [resolvable:$true] %s96
      %102 = dma.hbm_to_vmem [thread:$0]  %s95, 256, %s97, [#allocation12], 128, 128, 8
    $region25: #{tpu_custom_call.1} parent=1 // pred_fallthru
      _
    // Predicated region
    $region26: #{tpu_custom_call.1} parent=1 // pred_check
      _
    $region27: #{tpu_custom_call.1} parent=1 // pred_check_branch
      %104 = sbr.rel (0) target = $region29
    $region28: #{tpu_custom_call.1} parent=1 // pred_region
      %106 = vsyncadd [#allocation12], 0
      %s107 = sshll.u32 %s6, 4
      %s108 = int_to_ptr.hbm [resolvable:$true] %s107
      %s109 = sshll.u32 [#allocation13], 4
      %s110 = int_to_ptr.vmem [resolvable:$true] %s109
      %115 = dma.hbm_to_vmem [thread:$0]  %s108, 6144, %s110, [#allocation12], 128, 128, 8
    $region29: #{tpu_custom_call.1} parent=1 // pred_fallthru
      _
    // Predicated region
    $region30: #{tpu_custom_call.1} parent=1 // pred_check
      _
    $region31: #{tpu_custom_call.1} parent=1 // pred_check_branch
      %117 = sbr.rel (0) target = $region33
    $region32: #{tpu_custom_call.1} parent=1 // pred_region
      %119 = vsyncadd [#allocation15], 0
      %s120 = sshll.u32 %s7, 4
      %s121 = int_to_ptr.hbm [resolvable:$true] %s120
      %s122 = sshll.u32 [#allocation14], 4
      %s123 = int_to_ptr.vmem [resolvable:$true] %s122
      %128 = dma.hbm_to_vmem [thread:$0]  %s121, 256, %s123, [#allocation15], 128, 128, 8
    $region33: #{tpu_custom_call.1} parent=1 // pred_fallthru
      _
    // Predicated region
    $region34: #{tpu_custom_call.1} parent=1 // pred_check
      _
    $region35: #{tpu_custom_call.1} parent=1 // pred_check_branch
      %130 = sbr.rel (0) target = $region37
    $region36: #{tpu_custom_call.1} parent=1 // pred_region
      %132 = vsyncadd [#allocation15], 0
      %s133 = sshll.u32 %s8, 4
      %s134 = int_to_ptr.hbm [resolvable:$true] %s133
      %s135 = sshll.u32 [#allocation16], 4
      %s136 = int_to_ptr.vmem [resolvable:$true] %s135
      %141 = dma.hbm_to_vmem [thread:$0]  %s134, 256, %s136, [#allocation15], 128, 128, 8
    $region37: #{tpu_custom_call.1} parent=1 // pred_fallthru
      _
    // Predicated region
    $region38: #{tpu_custom_call.1} parent=1 // pred_check
      _
    $region39: #{tpu_custom_call.1} parent=1 // pred_check_branch
      %143 = sbr.rel (0) target = $region41
    $region40: #{tpu_custom_call.1} parent=1 // pred_region
      %145 = vsyncadd [#allocation18], 0
      %s146 = sshll.u32 %s9, 4
      %s147 = int_to_ptr.hbm [resolvable:$true] %s146
      %s148 = sshll.u32 [#allocation17], 4
      %s149 = int_to_ptr.vmem [resolvable:$true] %s148
      %154 = dma.hbm_to_vmem [thread:$0]  %s147, 4096, %s149, [#allocation18], 256, 256, 16
    $region41: #{tpu_custom_call.1} parent=1 // pred_fallthru
      _
    // Predicated region
    $region42: #{tpu_custom_call.1} parent=1 // pred_check
      _
    $region43: #{tpu_custom_call.1} parent=1 // pred_check_branch
      %156 = sbr.rel (0) target = $region45
    $region44: #{tpu_custom_call.1} parent=1 // pred_region
      %158 = vsyncadd [#allocation18], 0
      %s159 = sshll.u32 %s10, 4
      %s160 = int_to_ptr.hbm [resolvable:$true] %s159
      %s161 = sshll.u32 [#allocation19], 4
      %s162 = int_to_ptr.vmem [resolvable:$true] %s161
      %167 = dma.hbm_to_vmem [thread:$0]  %s160, 4096, %s162, [#allocation18], 128, 128, 8
    $region45: #{tpu_custom_call.1} parent=1 // pred_fallthru
      _
    // Predicated region
    $region46: #{tpu_custom_call.1} parent=1 // pred_check
      _
    $region47: #{tpu_custom_call.1} parent=1 // pred_check_branch
      %169 = sbr.rel (0) target = $region49
    $region48: #{tpu_custom_call.1} parent=1 // pred_region
      %171 = vsyncadd [#allocation21], 0
      %s172 = sshll.u32 %s11, 4
      %s173 = int_to_ptr.hbm [resolvable:$true] %s172
      %s174 = sshll.u32 [#allocation20], 4
      %s175 = int_to_ptr.vmem [resolvable:$true] %s174
      %180 = dma.hbm_to_vmem [thread:$0]  %s173, 2048, %s175, [#allocation21], 128, 128, 8
    $region49: #{tpu_custom_call.1} parent=1 // pred_fallthru
      _
    // Predicated region
    $region50: #{tpu_custom_call.1} parent=1 // pred_check
      _
    $region51: #{tpu_custom_call.1} parent=1 // pred_check_branch
      %182 = sbr.rel (0) target = $region53
    $region52: #{tpu_custom_call.1} parent=1 // pred_region
      %184 = dma.done [#allocation3], 512
    $region53: #{tpu_custom_call.1} parent=1 // pred_fallthru
      _
    // Predicated region
    $region54: #{tpu_custom_call.1} parent=1 // pred_check
      _
    $region55: #{tpu_custom_call.1} parent=1 // pred_check_branch
      %186 = sbr.rel (0) target = $region57
    $region56: #{tpu_custom_call.1} parent=1 // pred_region
      %188 = dma.done [#allocation6], 256
    $region57: #{tpu_custom_call.1} parent=1 // pred_fallthru
      _
    // Predicated region
    $region58: #{tpu_custom_call.1} parent=1 // pred_check
      _
    $region59: #{tpu_custom_call.1} parent=1 // pred_check_branch
      %190 = sbr.rel (0) target = $region61
    $region60: #{tpu_custom_call.1} parent=1 // pred_region
      %192 = dma.done [#allocation6], 256
    $region61: #{tpu_custom_call.1} parent=1 // pred_fallthru
      _
    // Predicated region
    $region62: #{tpu_custom_call.1} parent=1 // pred_check
      _
    $region63: #{tpu_custom_call.1} parent=1 // pred_check_branch
      %194 = sbr.rel (0) target = $region65
    $region64: #{tpu_custom_call.1} parent=1 // pred_region
      %196 = dma.done [#allocation9], 6144
    $region65: #{tpu_custom_call.1} parent=1 // pred_fallthru
      _
    // Predicated region
    $region66: #{tpu_custom_call.1} parent=1 // pred_check
      _
    $region67: #{tpu_custom_call.1} parent=1 // pred_check_branch
      %198 = sbr.rel (0) target = $region69
    $region68: #{tpu_custom_call.1} parent=1 // pred_region
      %200 = dma.done [#allocation9], 256
    $region69: #{tpu_custom_call.1} parent=1 // pred_fallthru
      _
    // Predicated region
    $region70: #{tpu_custom_call.1} parent=1 // pred_check
      _
    $region71: #{tpu_custom_call.1} parent=1 // pred_check_branch
      %202 = sbr.rel (0) target = $region73
    $region72: #{tpu_custom_call.1} parent=1 // pred_region
      %204 = dma.done [#allocation12], 256
    $region73: #{tpu_custom_call.1} parent=1 // pred_fallthru
      _
    // Predicated region
    $region74: #{tpu_custom_call.1} parent=1 // pred_check
      _
    $region75: #{tpu_custom_call.1} parent=1 // pred_check_branch
      %206 = sbr.rel (0) target = $region77
    $region76: #{tpu_custom_call.1} parent=1 // pred_region
      %208 = dma.done [#allocation12], 6144
    $region77: #{tpu_custom_call.1} parent=1 // pred_fallthru
      _
    // Predicated region
    $region78: #{tpu_custom_call.1} parent=1 // pred_check
      _
    $region79: #{tpu_custom_call.1} parent=1 // pred_check_branch
      %210 = sbr.rel (0) target = $region81
    $region80: #{tpu_custom_call.1} parent=1 // pred_region
      %212 = dma.done [#allocation15], 256
    $region81: #{tpu_custom_call.1} parent=1 // pred_fallthru
      _
    // Predicated region
    $region82: #{tpu_custom_call.1} parent=1 // pred_check
      _
    $region83: #{tpu_custom_call.1} parent=1 // pred_check_branch
      %214 = sbr.rel (0) target = $region85
    $region84: #{tpu_custom_call.1} parent=1 // pred_region
      %216 = dma.done [#allocation15], 256
    $region85: #{tpu_custom_call.1} parent=1 // pred_fallthru
      _
    // Predicated region
    $region86: #{tpu_custom_call.1} parent=1 // pred_check
      _
    $region87: #{tpu_custom_call.1} parent=1 // pred_check_branch
      %218 = sbr.rel (0) target = $region89
    $region88: #{tpu_custom_call.1} parent=1 // pred_region
      %220 = dma.done [#allocation18], 4096
    $region89: #{tpu_custom_call.1} parent=1 // pred_fallthru
      _
    // Predicated region
    $region90: #{tpu_custom_call.1} parent=1 // pred_check
      _
    $region91: #{tpu_custom_call.1} parent=1 // pred_check_branch
      %222 = sbr.rel (0) target = $region93
    $region92: #{tpu_custom_call.1} parent=1 // pred_region
      %224 = dma.done [#allocation18], 4096
    $region93: #{tpu_custom_call.1} parent=1 // pred_fallthru
      _
    // Predicated region
    $region94: #{tpu_custom_call.1} parent=1 // pred_check
      _
    $region95: #{tpu_custom_call.1} parent=1 // pred_check_branch
      %226 = sbr.rel (0) target = $region97
    $region96: #{tpu_custom_call.1} parent=1 // pred_region
      %228 = dma.done [#allocation21], 2048
    $region97: #{tpu_custom_call.1} parent=1 // pred_fallthru
      _
    %v229 = vld [vmem:[#allocation2] sm:$0xff]
    %v230 = vld [vmem:[#allocation2 + $0x8] sm:$0xff]
    %v231 = vld [vmem:[#allocation2 + $0x10] sm:$0xff]
    %v232 = vld [vmem:[#allocation2 + $0x18] sm:$0xff]
    %v233 = vld [vmem:[#allocation5] sm:$0xff]
    %v234 = vld [vmem:[#allocation5 + $0x8] sm:$0xff]
    %v235 = vld [vmem:[#allocation7] sm:$0xff]
    %v236 = vld [vmem:[#allocation7 + $0x8] sm:$0xff]
    %v237 = vld [vmem:[#allocation8] sm:$0xff]
    %v238 = vld [vmem:[#allocation8 + $0x8] sm:$0xff]
    %v239 = vld [vmem:[#allocation8 + $0x10] sm:$0xff]
    %v240 = vld [vmem:[#allocation8 + $0x18] sm:$0xff]
    %v241 = vld [vmem:[#allocation8 + $0x20] sm:$0xff]
    %v242 = vld [vmem:[#allocation8 + $0x28] sm:$0xff]
    %v243 = vld [vmem:[#allocation8 + $0x30] sm:$0xff]
    %v244 = vld [vmem:[#allocation8 + $0x38] sm:$0xff]
    %v245 = vld [vmem:[#allocation8 + $0x40] sm:$0xff]
    %v246 = vld [vmem:[#allocation8 + $0x48] sm:$0xff]
    %v247 = vld [vmem:[#allocation8 + $0x50] sm:$0xff]
    %v248 = vld [vmem:[#allocation8 + $0x58] sm:$0xff]
    %v249 = vld [vmem:[#allocation8 + $0x60] sm:$0xff]
    %v250 = vld [vmem:[#allocation8 + $0x68] sm:$0xff]
    %v251 = vld [vmem:[#allocation8 + $0x70] sm:$0xff]
    %v252 = vld [vmem:[#allocation8 + $0x78] sm:$0xff]
    %v253 = vld [vmem:[#allocation8 + $0x80] sm:$0xff]
    %v254 = vld [vmem:[#allocation8 + $0x88] sm:$0xff]
    %v255 = vld [vmem:[#allocation8 + $0x90] sm:$0xff]
    %v256 = vld [vmem:[#allocation8 + $0x98] sm:$0xff]
    %v257 = vld [vmem:[#allocation8 + $0xa0] sm:$0xff]
    %v258 = vld [vmem:[#allocation8 + $0xa8] sm:$0xff]
    %v259 = vld [vmem:[#allocation8 + $0xb0] sm:$0xff]
    %v260 = vld [vmem:[#allocation8 + $0xb8] sm:$0xff]
    %v261 = vld [vmem:[#allocation8 + $0xc0] sm:$0xff]
    %v262 = vld [vmem:[#allocation8 + $0xc8] sm:$0xff]
    %v263 = vld [vmem:[#allocation8 + $0xd0] sm:$0xff]
    %v264 = vld [vmem:[#allocation8 + $0xd8] sm:$0xff]
    %v265 = vld [vmem:[#allocation8 + $0xe0] sm:$0xff]
    %v266 = vld [vmem:[#allocation8 + $0xe8] sm:$0xff]
    %v267 = vld [vmem:[#allocation8 + $0xf0] sm:$0xff]
    %v268 = vld [vmem:[#allocation8 + $0xf8] sm:$0xff]
    %v269 = vld [vmem:[#allocation8 + $0x100] sm:$0xff]
    %v270 = vld [vmem:[#allocation8 + $0x108] sm:$0xff]
    %v271 = vld [vmem:[#allocation8 + $0x110] sm:$0xff]
    %v272 = vld [vmem:[#allocation8 + $0x118] sm:$0xff]
    %v273 = vld [vmem:[#allocation8 + $0x120] sm:$0xff]
    %v274 = vld [vmem:[#allocation8 + $0x128] sm:$0xff]
    %v275 = vld [vmem:[#allocation8 + $0x130] sm:$0xff]
    %v276 = vld [vmem:[#allocation8 + $0x138] sm:$0xff]
    %v277 = vld [vmem:[#allocation8 + $0x140] sm:$0xff]
    %v278 = vld [vmem:[#allocation8 + $0x148] sm:$0xff]
    %v279 = vld [vmem:[#allocation8 + $0x150] sm:$0xff]
    %v280 = vld [vmem:[#allocation8 + $0x158] sm:$0xff]
    %v281 = vld [vmem:[#allocation8 + $0x160] sm:$0xff]
    %v282 = vld [vmem:[#allocation8 + $0x168] sm:$0xff]
    %v283 = vld [vmem:[#allocation8 + $0x170] sm:$0xff]
    %v284 = vld [vmem:[#allocation8 + $0x178] sm:$0xff]
    %285 = vadd.xlane.f32.xlu0 %v229
    %v286 = vpop.xlane.xlu0 %285
    %287 = vadd.xlane.f32.xlu0 %v230
    %v288 = vpop.xlane.xlu0 %287
    %289 = vadd.xlane.f32.xlu0 %v231
    %v290 = vpop.xlane.xlu0 %289
    %291 = vadd.xlane.f32.xlu0 %v232
    %v292 = vpop.xlane.xlu0 %291
    %v293 = vadd.f32 %v286, %v288
    %v294 = vrot.slane %v293, 4
    %v295 = vadd.f32 %v293, %v294
    %v296 = vrot.slane %v295, 2
    %v297 = vadd.f32 %v295, %v296
    %v298 = vrot.slane %v297, 1
    %v299 = vadd.f32 %v297, %v298
    %v300 = vadd.f32 %v290, %v292
    %v301 = vrot.slane %v300, 4
    %v302 = vadd.f32 %v300, %v301
    %v303 = vrot.slane %v302, 2
    %v304 = vadd.f32 %v302, %v303
    %v305 = vrot.slane %v304, 1
    %v306 = vadd.f32 %v304, %v305
    %v307 = vmul.f32 %v299, 0.0009765625
    %v308 = vmul.f32 %v306, 0.0009765625
    %v309 = vsub.f32 %v229, %v307
    %v310 = vsub.f32 %v230, %v307
    %v311 = vsub.f32 %v231, %v308
    %v312 = vsub.f32 %v232, %v308
    %v313 = vmul.f32 %v229, %v229
    %v314 = vmul.f32 %v230, %v230
    %v315 = vmul.f32 %v231, %v231
    %v316 = vmul.f32 %v232, %v232
    %317 = vadd.xlane.f32.xlu0 %v313
    %v318 = vpop.xlane.xlu0 %317
    %319 = vadd.xlane.f32.xlu0 %v314
    %v320 = vpop.xlane.xlu0 %319
    %321 = vadd.xlane.f32.xlu0 %v315
    %v322 = vpop.xlane.xlu0 %321
    %323 = vadd.xlane.f32.xlu0 %v316
    %v324 = vpop.xlane.xlu0 %323
    %v325 = vadd.f32 %v318, %v320
    %v326 = vrot.slane %v325, 4
    %v327 = vadd.f32 %v325, %v326
    %v328 = vrot.slane %v327, 2
    %v329 = vadd.f32 %v327, %v328
    %v330 = vrot.slane %v329, 1
    %v331 = vadd.f32 %v329, %v330
    %v332 = vadd.f32 %v322, %v324
    %v333 = vrot.slane %v332, 4
    %v334 = vadd.f32 %v332, %v333
    %v335 = vrot.slane %v334, 2
    %v336 = vadd.f32 %v334, %v335
    %v337 = vrot.slane %v336, 1
    %v338 = vadd.f32 %v336, %v337
    %v339 = vmul.f32 %v331, 0.0009765625
    %v340 = vmul.f32 %v338, 0.0009765625
    %v341 = vmul.f32 %v307, %v307
    %v342 = vmul.f32 %v308, %v308
    %v343 = vsub.f32 %v339, %v341
    %v344 = vsub.f32 %v340, %v342
    %v345 = vadd.f32 %v343, 1e-05
    %v346 = vadd.f32 %v344, 1e-05
    %v347 = vrsqrt.pop %v345
    %v348 = vmul.f32 %v347, %v345
    %v349 = vmul.f32 %v348, %v347
    %v350 = vmul.f32 0.5, %v349
    %v351 = vsub.f32 1.5, %v350
    %v352 = vmul.f32 %v347, %v351
    %vm353 = vweird.f32 %v345
    %vm354 = vweird.f32 %v347
    %vm355 = vmor %vm353, %vm354
    %v356 = vsel %vm355, %v347, %v352
    %v357 = vrsqrt.pop %v346
    %v358 = vmul.f32 %v357, %v346
    %v359 = vmul.f32 %v358, %v357
    %v360 = vmul.f32 0.5, %v359
    %v361 = vsub.f32 1.5, %v360
    %v362 = vmul.f32 %v357, %v361
    %vm363 = vweird.f32 %v346
    %vm364 = vweird.f32 %v357
    %vm365 = vmor %vm363, %vm364
    %v366 = vsel %vm365, %v357, %v362
    %v367 = vmul.f32 %v309, %v356
    %v368 = vmul.f32 %v310, %v356
    %v369 = vmul.f32 %v311, %v366
    %v370 = vmul.f32 %v312, %v366
    %v371 = vmul.f32 %v367, %v233
    %v372 = vmul.f32 %v368, %v234
    %v373 = vmul.f32 %v369, %v233
    %v374 = vmul.f32 %v370, %v234
    %v375 = vadd.f32 %v371, %v235
    %v376 = vadd.f32 %v372, %v236
    %v377 = vadd.f32 %v373, %v235
    %v378 = vadd.f32 %v374, %v236
    %vm383 = vcmask 1040384
    %v384 = vrot.slane %v375, 7
    %v385 = vrot.slane %v376, 7
    %v386 = vsel %vm383, %v384, %v385
    %v387 = vrot.slane %v377, 7
    %v388 = vrot.slane %v378, 7
    %v389 = vsel %vm383, %v387, %v388
    %v394 = vsel %vm383, 0.0, %v384
    %v395 = vsel %vm383, 0.0, %v387
    %vm396 = vcmask 1046528
    %v397 = vrot.slane %v375, 1
    %v398 = vrot.slane %v376, 1
    %v399 = vsel %vm396, %v397, %v398
    %v400 = vrot.slane %v377, 1
    %v401 = vrot.slane %v378, 1
    %v402 = vsel %vm396, %v400, %v401
    %v407 = vsel %vm396, %v398, 0.0
    %v408 = vsel %vm396, %v401, 0.0
    %409 = vmatpush.msra.mxu0 %v252
    %410 = vmatpush.msra.mxu0 %v251
    %411 = vmatpush.msra.mxu0 %v250
    %412 = vmatpush.msra.mxu0 %v249
    %413 = vmatpush.msra.mxu0 %v248
    %414 = vmatpush.msra.mxu0 %v247
    %415 = vmatpush.msra.mxu0 %v246
    %416 = vmatpush.msra.mxu0 %v245
    %417 = vmatpush.msra.mxu0 %v244
    %418 = vmatpush.msra.mxu0 %v243
    %419 = vmatpush.msra.mxu0 %v242
    %420 = vmatpush.msra.mxu0 %v241
    %421 = vmatpush.msra.mxu0 %v240
    %422 = vmatpush.msra.mxu0 %v239
    %423 = vmatpush.msra.mxu0 %v238
    %424 = vmatpush.msra.mxu0 %v237
    %425 = vmatmul.f32.gmra.mxu0 %v394
    %v426 = vpop.f32.mrf.mxu0
    %v427 = vadd.f32 0.0, %v426
    %428 = vmatmul.f32.gmra.mxu0 %v386
    %v429 = vpop.f32.mrf.mxu0
    %v430 = vadd.f32 0.0, %v429
    %431 = vmatmul.f32.gmra.mxu0 %v395
    %v432 = vpop.f32.mrf.mxu0
    %v433 = vadd.f32 0.0, %v432
    %434 = vmatmul.f32.gmra.mxu0 %v389
    %v435 = vpop.f32.mrf.mxu0
    %v436 = vadd.f32 0.0, %v435
    %437 = vdwg.mxu0
    %438 = vmatpush.msra.mxu0 %v268
    %439 = vmatpush.msra.mxu0 %v267
    %440 = vmatpush.msra.mxu0 %v266
    %441 = vmatpush.msra.mxu0 %v265
    %442 = vmatpush.msra.mxu0 %v264
    %443 = vmatpush.msra.mxu0 %v263
    %444 = vmatpush.msra.mxu0 %v262
    %445 = vmatpush.msra.mxu0 %v261
    %446 = vmatpush.msra.mxu0 %v260
    %447 = vmatpush.msra.mxu0 %v259
    %448 = vmatpush.msra.mxu0 %v258
    %449 = vmatpush.msra.mxu0 %v257
    %450 = vmatpush.msra.mxu0 %v256
    %451 = vmatpush.msra.mxu0 %v255
    %452 = vmatpush.msra.mxu0 %v254
    %453 = vmatpush.msra.mxu0 %v253
    %454 = vmatmul.f32.gmra.mxu0 %v375
    %v455 = vpop.f32.mrf.mxu0
    %v456 = vadd.f32 %v427, %v455
    %457 = vmatmul.f32.gmra.mxu0 %v376
    %v458 = vpop.f32.mrf.mxu0
    %v459 = vadd.f32 %v430, %v458
    %460 = vmatmul.f32.gmra.mxu0 %v377
    %v461 = vpop.f32.mrf.mxu0
    %v462 = vadd.f32 %v433, %v461
    %463 = vmatmul.f32.gmra.mxu0 %v378
    %v464 = vpop.f32.mrf.mxu0
    %v465 = vadd.f32 %v436, %v464
    %466 = vdwg.mxu0
    %467 = vmatpush.msra.mxu0 %v284
    %468 = vmatpush.msra.mxu0 %v283
    %469 = vmatpush.msra.mxu0 %v282
    %470 = vmatpush.msra.mxu0 %v281
    %471 = vmatpush.msra.mxu0 %v280
    %472 = vmatpush.msra.mxu0 %v279
    %473 = vmatpush.msra.mxu0 %v278
    %474 = vmatpush.msra.mxu0 %v277
    %475 = vmatpush.msra.mxu0 %v276
    %476 = vmatpush.msra.mxu0 %v275
    %477 = vmatpush.msra.mxu0 %v274
    %478 = vmatpush.msra.mxu0 %v273
    %479 = vmatpush.msra.mxu0 %v272
    %480 = vmatpush.msra.mxu0 %v271
    %481 = vmatpush.msra.mxu0 %v270
    %482 = vmatpush.msra.mxu0 %v269
    %483 = vmatmul.f32.gmra.mxu0 %v399
    %v484 = vpop.f32.mrf.mxu0
    %v485 = vadd.f32 %v456, %v484
    %486 = vmatmul.f32.gmra.mxu0 %v407
    %v487 = vpop.f32.mrf.mxu0
    %v488 = vadd.f32 %v459, %v487
    %489 = vmatmul.f32.gmra.mxu0 %v402
    %v490 = vpop.f32.mrf.mxu0
    %v491 = vadd.f32 %v462, %v490
    %492 = vmatmul.f32.gmra.mxu0 %v408
    %v493 = vpop.f32.mrf.mxu0
    %v494 = vadd.f32 %v465, %v493
    %495 = vdwg.mxu0
    %vm496 = vcmp.gt.f32.partialorder %v485, 20.0
    %vm497 = vcmp.gt.f32.partialorder %v488, 20.0
    %vm498 = vcmp.gt.f32.partialorder %v491, 20.0
    %vm499 = vcmp.gt.f32.partialorder %v494, 20.0
    %v500 = vmin.f32 %v485, 20.0
    %v501 = vmin.f32 %v488, 20.0
    %v502 = vmin.f32 %v491, 20.0
    %v503 = vmin.f32 %v494, 20.0
    %v504 = vmul.f32 %v500, 1.442695
    %v505 = vpow.pop %v504
    %v506 = vmul.f32 %v501, 1.442695
    %v507 = vpow.pop %v506
    %v508 = vmul.f32 %v502, 1.442695
    %v509 = vpow.pop %v508
    %v510 = vmul.f32 %v503, 1.442695
    %v511 = vpow.pop %v510
    %v512 = vadd.f32 %v505, 1.0
    %v513 = vlog2.pop %v512
    %v514 = vmul.f32 %v513, 0.6931472
    %v515 = vmul.f32 -0.5, %v505
    %v516 = vadd.f32 %v515, 1.0
    %v517 = vmul.f32 %v516, %v505
    %v518 = vand.u32 2147483647, %v505
    %vm519 = vcmp.lt.f32.partialorder %v518, 0.0004427343
    %v520 = vsel %vm519, %v517, %v514
    %v521 = vadd.f32 %v507, 1.0
    %v522 = vlog2.pop %v521
    %v523 = vmul.f32 %v522, 0.6931472
    %v524 = vmul.f32 -0.5, %v507
    %v525 = vadd.f32 %v524, 1.0
    %v526 = vmul.f32 %v525, %v507
    %v527 = vand.u32 2147483647, %v507
    %vm528 = vcmp.lt.f32.partialorder %v527, 0.0004427343
    %v529 = vsel %vm528, %v526, %v523
    %v530 = vadd.f32 %v509, 1.0
    %v531 = vlog2.pop %v530
    %v532 = vmul.f32 %v531, 0.6931472
    %v533 = vmul.f32 -0.5, %v509
    %v534 = vadd.f32 %v533, 1.0
    %v535 = vmul.f32 %v534, %v509
    %v536 = vand.u32 2147483647, %v509
    %vm537 = vcmp.lt.f32.partialorder %v536, 0.0004427343
    %v538 = vsel %vm537, %v535, %v532
    %v539 = vadd.f32 %v511, 1.0
    %v540 = vlog2.pop %v539
    %v541 = vmul.f32 %v540, 0.6931472
    %v542 = vmul.f32 -0.5, %v511
    %v543 = vadd.f32 %v542, 1.0
    %v544 = vmul.f32 %v543, %v511
    %v545 = vand.u32 2147483647, %v511
    %vm546 = vcmp.lt.f32.partialorder %v545, 0.0004427343
    %v547 = vsel %vm546, %v544, %v541
    %v548 = vsel %vm496, %v485, %v520
    %v549 = vsel %vm497, %v488, %v529
    %v550 = vsel %vm498, %v491, %v538
    %v551 = vsel %vm499, %v494, %v547
    %v552 = vld [vmem:[#allocation10] sm:$0xff]
    %v553 = vld [vmem:[#allocation10 + $0x8] sm:$0xff]
    %v554 = vld [vmem:[#allocation11] sm:$0xff]
    %v555 = vld [vmem:[#allocation11 + $0x8] sm:$0xff]
    %v556 = vld [vmem:[#allocation13] sm:$0xff]
    %v557 = vld [vmem:[#allocation13 + $0x8] sm:$0xff]
    %v558 = vld [vmem:[#allocation13 + $0x10] sm:$0xff]
    %v559 = vld [vmem:[#allocation13 + $0x18] sm:$0xff]
    %v560 = vld [vmem:[#allocation13 + $0x20] sm:$0xff]
    %v561 = vld [vmem:[#allocation13 + $0x28] sm:$0xff]
    %v562 = vld [vmem:[#allocation13 + $0x30] sm:$0xff]
    %v563 = vld [vmem:[#allocation13 + $0x38] sm:$0xff]
    %v564 = vld [vmem:[#allocation13 + $0x40] sm:$0xff]
    %v565 = vld [vmem:[#allocation13 + $0x48] sm:$0xff]
    %v566 = vld [vmem:[#allocation13 + $0x50] sm:$0xff]
    %v567 = vld [vmem:[#allocation13 + $0x58] sm:$0xff]
    %v568 = vld [vmem:[#allocation13 + $0x60] sm:$0xff]
    %v569 = vld [vmem:[#allocation13 + $0x68] sm:$0xff]
    %v570 = vld [vmem:[#allocation13 + $0x70] sm:$0xff]
    %v571 = vld [vmem:[#allocation13 + $0x78] sm:$0xff]
    %v572 = vld [vmem:[#allocation13 + $0x80] sm:$0xff]
    %v573 = vld [vmem:[#allocation13 + $0x88] sm:$0xff]
    %v574 = vld [vmem:[#allocation13 + $0x90] sm:$0xff]
    %v575 = vld [vmem:[#allocation13 + $0x98] sm:$0xff]
    %v576 = vld [vmem:[#allocation13 + $0xa0] sm:$0xff]
    %v577 = vld [vmem:[#allocation13 + $0xa8] sm:$0xff]
    %v578 = vld [vmem:[#allocation13 + $0xb0] sm:$0xff]
    %v579 = vld [vmem:[#allocation13 + $0xb8] sm:$0xff]
    %v580 = vld [vmem:[#allocation13 + $0xc0] sm:$0xff]
    %v581 = vld [vmem:[#allocation13 + $0xc8] sm:$0xff]
    %v582 = vld [vmem:[#allocation13 + $0xd0] sm:$0xff]
    %v583 = vld [vmem:[#allocation13 + $0xd8] sm:$0xff]
    %v584 = vld [vmem:[#allocation13 + $0xe0] sm:$0xff]
    %v585 = vld [vmem:[#allocation13 + $0xe8] sm:$0xff]
    %v586 = vld [vmem:[#allocation13 + $0xf0] sm:$0xff]
    %v587 = vld [vmem:[#allocation13 + $0xf8] sm:$0xff]
    %v588 = vld [vmem:[#allocation13 + $0x100] sm:$0xff]
    %v589 = vld [vmem:[#allocation13 + $0x108] sm:$0xff]
    %v590 = vld [vmem:[#allocation13 + $0x110] sm:$0xff]
    %v591 = vld [vmem:[#allocation13 + $0x118] sm:$0xff]
    %v592 = vld [vmem:[#allocation13 + $0x120] sm:$0xff]
    %v593 = vld [vmem:[#allocation13 + $0x128] sm:$0xff]
    %v594 = vld [vmem:[#allocation13 + $0x130] sm:$0xff]
    %v595 = vld [vmem:[#allocation13 + $0x138] sm:$0xff]
    %v596 = vld [vmem:[#allocation13 + $0x140] sm:$0xff]
    %v597 = vld [vmem:[#allocation13 + $0x148] sm:$0xff]
    %v598 = vld [vmem:[#allocation13 + $0x150] sm:$0xff]
    %v599 = vld [vmem:[#allocation13 + $0x158] sm:$0xff]
    %v600 = vld [vmem:[#allocation13 + $0x160] sm:$0xff]
    %v601 = vld [vmem:[#allocation13 + $0x168] sm:$0xff]
    %v602 = vld [vmem:[#allocation13 + $0x170] sm:$0xff]
    %v603 = vld [vmem:[#allocation13 + $0x178] sm:$0xff]
    %604 = vadd.xlane.f32.xlu0 %v548
    %v605 = vpop.xlane.xlu0 %604
    %606 = vadd.xlane.f32.xlu0 %v549
    %v607 = vpop.xlane.xlu0 %606
    %608 = vadd.xlane.f32.xlu0 %v550
    %v609 = vpop.xlane.xlu0 %608
    %610 = vadd.xlane.f32.xlu0 %v551
    %v611 = vpop.xlane.xlu0 %610
    %v612 = vadd.f32 %v605, %v607
    %v613 = vrot.slane %v612, 4
    %v614 = vadd.f32 %v612, %v613
    %v615 = vrot.slane %v614, 2
    %v616 = vadd.f32 %v614, %v615
    %v617 = vrot.slane %v616, 1
    %v618 = vadd.f32 %v616, %v617
    %v619 = vadd.f32 %v609, %v611
    %v620 = vrot.slane %v619, 4
    %v621 = vadd.f32 %v619, %v620
    %v622 = vrot.slane %v621, 2
    %v623 = vadd.f32 %v621, %v622
    %v624 = vrot.slane %v623, 1
    %v625 = vadd.f32 %v623, %v624
    %v626 = vmul.f32 %v618, 0.00048828125
    %v627 = vmul.f32 %v625, 0.00048828125
    %v628 = vsub.f32 %v548, %v626
    %v629 = vsub.f32 %v549, %v626
    %v630 = vsub.f32 %v550, %v627
    %v631 = vsub.f32 %v551, %v627
    %v632 = vmul.f32 %v628, %v628
    %v633 = vmul.f32 %v629, %v629
    %v634 = vmul.f32 %v630, %v630
    %v635 = vmul.f32 %v631, %v631
    %636 = vadd.xlane.f32.xlu0 %v632
    %v637 = vpop.xlane.xlu0 %636
    %638 = vadd.xlane.f32.xlu0 %v633
    %v639 = vpop.xlane.xlu0 %638
    %640 = vadd.xlane.f32.xlu0 %v634
    %v641 = vpop.xlane.xlu0 %640
    %642 = vadd.xlane.f32.xlu0 %v635
    %v643 = vpop.xlane.xlu0 %642
    %v644 = vadd.f32 %v637, %v639
    %v645 = vrot.slane %v644, 4
    %v646 = vadd.f32 %v644, %v645
    %v647 = vrot.slane %v646, 2
    %v648 = vadd.f32 %v646, %v647
    %v649 = vrot.slane %v648, 1
    %v650 = vadd.f32 %v648, %v649
    %v651 = vadd.f32 %v641, %v643
    %v652 = vrot.slane %v651, 4
    %v653 = vadd.f32 %v651, %v652
    %v654 = vrot.slane %v653, 2
    %v655 = vadd.f32 %v653, %v654
    %v656 = vrot.slane %v655, 1
    %v657 = vadd.f32 %v655, %v656
    %v658 = vmul.f32 %v650, 0.00048828125
    %v659 = vmul.f32 %v657, 0.00048828125
    %v660 = vadd.f32 %v658, 1e-05
    %v661 = vadd.f32 %v659, 1e-05
    %v662 = vrsqrt.pop %v660
    %v663 = vmul.f32 %v662, %v660
    %v664 = vmul.f32 %v663, %v662
    %v665 = vmul.f32 0.5, %v664
    %v666 = vsub.f32 1.5, %v665
    %v667 = vmul.f32 %v662, %v666
    %vm668 = vweird.f32 %v660
    %vm669 = vweird.f32 %v662
    %vm670 = vmor %vm668, %vm669
    %v671 = vsel %vm670, %v662, %v667
    %v672 = vrsqrt.pop %v661
    %v673 = vmul.f32 %v672, %v661
    %v674 = vmul.f32 %v673, %v672
    %v675 = vmul.f32 0.5, %v674
    %v676 = vsub.f32 1.5, %v675
    %v677 = vmul.f32 %v672, %v676
    %vm678 = vweird.f32 %v661
    %vm679 = vweird.f32 %v672
    %vm680 = vmor %vm678, %vm679
    %v681 = vsel %vm680, %v672, %v677
    %v682 = vmul.f32 %v628, %v671
    %v683 = vmul.f32 %v629, %v671
    %v684 = vmul.f32 %v630, %v681
    %v685 = vmul.f32 %v631, %v681
    %v686 = vmul.f32 %v682, %v552
    %v687 = vmul.f32 %v683, %v553
    %v688 = vmul.f32 %v684, %v552
    %v689 = vmul.f32 %v685, %v553
    %v690 = vadd.f32 %v686, %v554
    %v691 = vadd.f32 %v687, %v555
    %v692 = vadd.f32 %v688, %v554
    %v693 = vadd.f32 %v689, %v555
    %v698 = vrot.slane %v690, 7
    %v699 = vrot.slane %v691, 7
    %v700 = vsel %vm383, %v698, %v699
    %v701 = vrot.slane %v692, 7
    %v702 = vrot.slane %v693, 7
    %v703 = vsel %vm383, %v701, %v702
    %v708 = vsel %vm383, 0.0, %v698
    %v709 = vsel %vm383, 0.0, %v701
    %v710 = vrot.slane %v690, 1
    %v711 = vrot.slane %v691, 1
    %v712 = vsel %vm396, %v710, %v711
    %v713 = vrot.slane %v692, 1
    %v714 = vrot.slane %v693, 1
    %v715 = vsel %vm396, %v713, %v714
    %v720 = vsel %vm396, %v711, 0.0
    %v721 = vsel %vm396, %v714, 0.0
    %722 = vmatpush.msra.mxu0 %v571
    %723 = vmatpush.msra.mxu0 %v570
    %724 = vmatpush.msra.mxu0 %v569
    %725 = vmatpush.msra.mxu0 %v568
    %726 = vmatpush.msra.mxu0 %v567
    %727 = vmatpush.msra.mxu0 %v566
    %728 = vmatpush.msra.mxu0 %v565
    %729 = vmatpush.msra.mxu0 %v564
    %730 = vmatpush.msra.mxu0 %v563
    %731 = vmatpush.msra.mxu0 %v562
    %732 = vmatpush.msra.mxu0 %v561
    %733 = vmatpush.msra.mxu0 %v560
    %734 = vmatpush.msra.mxu0 %v559
    %735 = vmatpush.msra.mxu0 %v558
    %736 = vmatpush.msra.mxu0 %v557
    %737 = vmatpush.msra.mxu0 %v556
    %738 = vmatmul.f32.gmra.mxu0 %v708
    %v739 = vpop.f32.mrf.mxu0
    %v740 = vadd.f32 0.0, %v739
    %741 = vmatmul.f32.gmra.mxu0 %v700
    %v742 = vpop.f32.mrf.mxu0
    %v743 = vadd.f32 0.0, %v742
    %744 = vmatmul.f32.gmra.mxu0 %v709
    %v745 = vpop.f32.mrf.mxu0
    %v746 = vadd.f32 0.0, %v745
    %747 = vmatmul.f32.gmra.mxu0 %v703
    %v748 = vpop.f32.mrf.mxu0
    %v749 = vadd.f32 0.0, %v748
    %750 = vdwg.mxu0
    %751 = vmatpush.msra.mxu0 %v587
    %752 = vmatpush.msra.mxu0 %v586
    %753 = vmatpush.msra.mxu0 %v585
    %754 = vmatpush.msra.mxu0 %v584
    %755 = vmatpush.msra.mxu0 %v583
    %756 = vmatpush.msra.mxu0 %v582
    %757 = vmatpush.msra.mxu0 %v581
    %758 = vmatpush.msra.mxu0 %v580
    %759 = vmatpush.msra.mxu0 %v579
    %760 = vmatpush.msra.mxu0 %v578
    %761 = vmatpush.msra.mxu0 %v577
    %762 = vmatpush.msra.mxu0 %v576
    %763 = vmatpush.msra.mxu0 %v575
    %764 = vmatpush.msra.mxu0 %v574
    %765 = vmatpush.msra.mxu0 %v573
    %766 = vmatpush.msra.mxu0 %v572
    %767 = vmatmul.f32.gmra.mxu0 %v690
    %v768 = vpop.f32.mrf.mxu0
    %v769 = vadd.f32 %v740, %v768
    %770 = vmatmul.f32.gmra.mxu0 %v691
    %v771 = vpop.f32.mrf.mxu0
    %v772 = vadd.f32 %v743, %v771
    %773 = vmatmul.f32.gmra.mxu0 %v692
    %v774 = vpop.f32.mrf.mxu0
    %v775 = vadd.f32 %v746, %v774
    %776 = vmatmul.f32.gmra.mxu0 %v693
    %v777 = vpop.f32.mrf.mxu0
    %v778 = vadd.f32 %v749, %v777
    %779 = vdwg.mxu0
    %780 = vmatpush.msra.mxu0 %v603
    %781 = vmatpush.msra.mxu0 %v602
    %782 = vmatpush.msra.mxu0 %v601
    %783 = vmatpush.msra.mxu0 %v600
    %784 = vmatpush.msra.mxu0 %v599
    %785 = vmatpush.msra.mxu0 %v598
    %786 = vmatpush.msra.mxu0 %v597
    %787 = vmatpush.msra.mxu0 %v596
    %788 = vmatpush.msra.mxu0 %v595
    %789 = vmatpush.msra.mxu0 %v594
    %790 = vmatpush.msra.mxu0 %v593
    %791 = vmatpush.msra.mxu0 %v592
    %792 = vmatpush.msra.mxu0 %v591
    %793 = vmatpush.msra.mxu0 %v590
    %794 = vmatpush.msra.mxu0 %v589
    %795 = vmatpush.msra.mxu0 %v588
    %796 = vmatmul.f32.gmra.mxu0 %v712
    %v797 = vpop.f32.mrf.mxu0
    %v798 = vadd.f32 %v769, %v797
    %799 = vmatmul.f32.gmra.mxu0 %v720
    %v800 = vpop.f32.mrf.mxu0
    %v801 = vadd.f32 %v772, %v800
    %802 = vmatmul.f32.gmra.mxu0 %v715
    %v803 = vpop.f32.mrf.mxu0
    %v804 = vadd.f32 %v775, %v803
    %805 = vmatmul.f32.gmra.mxu0 %v721
    %v806 = vpop.f32.mrf.mxu0
    %v807 = vadd.f32 %v778, %v806
    %808 = vdwg.mxu0
    %vm809 = vcmp.gt.f32.partialorder %v798, 20.0
    %vm810 = vcmp.gt.f32.partialorder %v801, 20.0
    %vm811 = vcmp.gt.f32.partialorder %v804, 20.0
    %vm812 = vcmp.gt.f32.partialorder %v807, 20.0
    %v813 = vmin.f32 %v798, 20.0
    %v814 = vmin.f32 %v801, 20.0
    %v815 = vmin.f32 %v804, 20.0
    %v816 = vmin.f32 %v807, 20.0
    %v817 = vmul.f32 %v813, 1.442695
    %v818 = vpow.pop %v817
    %v819 = vmul.f32 %v814, 1.442695
    %v820 = vpow.pop %v819
    %v821 = vmul.f32 %v815, 1.442695
    %v822 = vpow.pop %v821
    %v823 = vmul.f32 %v816, 1.442695
    %v824 = vpow.pop %v823
    %v825 = vadd.f32 %v818, 1.0
    %v826 = vlog2.pop %v825
    %v827 = vmul.f32 %v826, 0.6931472
    %v828 = vmul.f32 -0.5, %v818
    %v829 = vadd.f32 %v828, 1.0
    %v830 = vmul.f32 %v829, %v818
    %v831 = vand.u32 2147483647, %v818
    %vm832 = vcmp.lt.f32.partialorder %v831, 0.0004427343
    %v833 = vsel %vm832, %v830, %v827
    %v834 = vadd.f32 %v820, 1.0
    %v835 = vlog2.pop %v834
    %v836 = vmul.f32 %v835, 0.6931472
    %v837 = vmul.f32 -0.5, %v820
    %v838 = vadd.f32 %v837, 1.0
    %v839 = vmul.f32 %v838, %v820
    %v840 = vand.u32 2147483647, %v820
    %vm841 = vcmp.lt.f32.partialorder %v840, 0.0004427343
    %v842 = vsel %vm841, %v839, %v836
    %v843 = vadd.f32 %v822, 1.0
    %v844 = vlog2.pop %v843
    %v845 = vmul.f32 %v844, 0.6931472
    %v846 = vmul.f32 -0.5, %v822
    %v847 = vadd.f32 %v846, 1.0
    %v848 = vmul.f32 %v847, %v822
    %v849 = vand.u32 2147483647, %v822
    %vm850 = vcmp.lt.f32.partialorder %v849, 0.0004427343
    %v851 = vsel %vm850, %v848, %v845
    %v852 = vadd.f32 %v824, 1.0
    %v853 = vlog2.pop %v852
    %v854 = vmul.f32 %v853, 0.6931472
    %v855 = vmul.f32 -0.5, %v824
    %v856 = vadd.f32 %v855, 1.0
    %v857 = vmul.f32 %v856, %v824
    %v858 = vand.u32 2147483647, %v824
    %vm859 = vcmp.lt.f32.partialorder %v858, 0.0004427343
    %v860 = vsel %vm859, %v857, %v854
    %v861 = vsel %vm809, %v798, %v833
    %v862 = vsel %vm810, %v801, %v842
    %v863 = vsel %vm811, %v804, %v851
    %v864 = vsel %vm812, %v807, %v860
    %v865 = vld [vmem:[#allocation14] sm:$0xff]
    %v866 = vld [vmem:[#allocation14 + $0x8] sm:$0xff]
    %v867 = vld [vmem:[#allocation16] sm:$0xff]
    %v868 = vld [vmem:[#allocation16 + $0x8] sm:$0xff]
    %v869 = vld [vmem:[#allocation17] sm:$0xff]
    %v870 = vld [vmem:[#allocation17 + $0x8] sm:$0xff]
    %v871 = vld [vmem:[#allocation17 + $0x10] sm:$0xff]
    %v872 = vld [vmem:[#allocation17 + $0x18] sm:$0xff]
    %v873 = vld [vmem:[#allocation17 + $0x20] sm:$0xff]
    %v874 = vld [vmem:[#allocation17 + $0x28] sm:$0xff]
    %v875 = vld [vmem:[#allocation17 + $0x30] sm:$0xff]
    %v876 = vld [vmem:[#allocation17 + $0x38] sm:$0xff]
    %v877 = vld [vmem:[#allocation17 + $0x40] sm:$0xff]
    %v878 = vld [vmem:[#allocation17 + $0x48] sm:$0xff]
    %v879 = vld [vmem:[#allocation17 + $0x50] sm:$0xff]
    %v880 = vld [vmem:[#allocation17 + $0x58] sm:$0xff]
    %v881 = vld [vmem:[#allocation17 + $0x60] sm:$0xff]
    %v882 = vld [vmem:[#allocation17 + $0x68] sm:$0xff]
    %v883 = vld [vmem:[#allocation17 + $0x70] sm:$0xff]
    %v884 = vld [vmem:[#allocation17 + $0x78] sm:$0xff]
    %v885 = vld [vmem:[#allocation17 + $0x80] sm:$0xff]
    %v886 = vld [vmem:[#allocation17 + $0x88] sm:$0xff]
    %v887 = vld [vmem:[#allocation17 + $0x90] sm:$0xff]
    %v888 = vld [vmem:[#allocation17 + $0x98] sm:$0xff]
    %v889 = vld [vmem:[#allocation17 + $0xa0] sm:$0xff]
    %v890 = vld [vmem:[#allocation17 + $0xa8] sm:$0xff]
    %v891 = vld [vmem:[#allocation17 + $0xb0] sm:$0xff]
    %v892 = vld [vmem:[#allocation17 + $0xb8] sm:$0xff]
    %v893 = vld [vmem:[#allocation17 + $0xc0] sm:$0xff]
    %v894 = vld [vmem:[#allocation17 + $0xc8] sm:$0xff]
    %v895 = vld [vmem:[#allocation17 + $0xd0] sm:$0xff]
    %v896 = vld [vmem:[#allocation17 + $0xd8] sm:$0xff]
    %v897 = vld [vmem:[#allocation17 + $0xe0] sm:$0xff]
    %v898 = vld [vmem:[#allocation17 + $0xe8] sm:$0xff]
    %v899 = vld [vmem:[#allocation17 + $0xf0] sm:$0xff]
    %v900 = vld [vmem:[#allocation17 + $0xf8] sm:$0xff]
    %v901 = vld [vmem:[#allocation19] sm:$0xff]
    %v902 = vld [vmem:[#allocation19 + $0x8] sm:$0xff]
    %v903 = vld [vmem:[#allocation19 + $0x10] sm:$0xff]
    %v904 = vld [vmem:[#allocation19 + $0x18] sm:$0xff]
    %v905 = vld [vmem:[#allocation19 + $0x20] sm:$0xff]
    %v906 = vld [vmem:[#allocation19 + $0x28] sm:$0xff]
    %v907 = vld [vmem:[#allocation19 + $0x30] sm:$0xff]
    %v908 = vld [vmem:[#allocation19 + $0x38] sm:$0xff]
    %v909 = vld [vmem:[#allocation19 + $0x40] sm:$0xff]
    %v910 = vld [vmem:[#allocation19 + $0x48] sm:$0xff]
    %v911 = vld [vmem:[#allocation19 + $0x50] sm:$0xff]
    %v912 = vld [vmem:[#allocation19 + $0x58] sm:$0xff]
    %v913 = vld [vmem:[#allocation19 + $0x60] sm:$0xff]
    %v914 = vld [vmem:[#allocation19 + $0x68] sm:$0xff]
    %v915 = vld [vmem:[#allocation19 + $0x70] sm:$0xff]
    %v916 = vld [vmem:[#allocation19 + $0x78] sm:$0xff]
    %v917 = vld [vmem:[#allocation19 + $0x80] sm:$0xff]
    %v918 = vld [vmem:[#allocation19 + $0x88] sm:$0xff]
    %v919 = vld [vmem:[#allocation19 + $0x90] sm:$0xff]
    %v920 = vld [vmem:[#allocation19 + $0x98] sm:$0xff]
    %v921 = vld [vmem:[#allocation19 + $0xa0] sm:$0xff]
    %v922 = vld [vmem:[#allocation19 + $0xa8] sm:$0xff]
    %v923 = vld [vmem:[#allocation19 + $0xb0] sm:$0xff]
    %v924 = vld [vmem:[#allocation19 + $0xb8] sm:$0xff]
    %v925 = vld [vmem:[#allocation19 + $0xc0] sm:$0xff]
    %v926 = vld [vmem:[#allocation19 + $0xc8] sm:$0xff]
    %v927 = vld [vmem:[#allocation19 + $0xd0] sm:$0xff]
    %v928 = vld [vmem:[#allocation19 + $0xd8] sm:$0xff]
    %v929 = vld [vmem:[#allocation19 + $0xe0] sm:$0xff]
    %v930 = vld [vmem:[#allocation19 + $0xe8] sm:$0xff]
    %v931 = vld [vmem:[#allocation19 + $0xf0] sm:$0xff]
    %v932 = vld [vmem:[#allocation19 + $0xf8] sm:$0xff]
    %v933 = vld [vmem:[#allocation20] sm:$0xff]
    %v934 = vld [vmem:[#allocation20 + $0x8] sm:$0xff]
    %v935 = vld [vmem:[#allocation20 + $0x10] sm:$0xff]
    %v936 = vld [vmem:[#allocation20 + $0x18] sm:$0xff]
    %v937 = vld [vmem:[#allocation20 + $0x20] sm:$0xff]
    %v938 = vld [vmem:[#allocation20 + $0x28] sm:$0xff]
    %v939 = vld [vmem:[#allocation20 + $0x30] sm:$0xff]
    %v940 = vld [vmem:[#allocation20 + $0x38] sm:$0xff]
    %v941 = vld [vmem:[#allocation20 + $0x40] sm:$0xff]
    %v942 = vld [vmem:[#allocation20 + $0x48] sm:$0xff]
    %v943 = vld [vmem:[#allocation20 + $0x50] sm:$0xff]
    %v944 = vld [vmem:[#allocation20 + $0x58] sm:$0xff]
    %v945 = vld [vmem:[#allocation20 + $0x60] sm:$0xff]
    %v946 = vld [vmem:[#allocation20 + $0x68] sm:$0xff]
    %v947 = vld [vmem:[#allocation20 + $0x70] sm:$0xff]
    %v948 = vld [vmem:[#allocation20 + $0x78] sm:$0xff]
    %949 = vadd.xlane.f32.xlu0 %v861
    %v950 = vpop.xlane.xlu0 %949
    %951 = vadd.xlane.f32.xlu0 %v862
    %v952 = vpop.xlane.xlu0 %951
    %953 = vadd.xlane.f32.xlu0 %v863
    %v954 = vpop.xlane.xlu0 %953
    %955 = vadd.xlane.f32.xlu0 %v864
    %v956 = vpop.xlane.xlu0 %955
    %v957 = vadd.f32 %v950, %v952
    %v958 = vrot.slane %v957, 4
    %v959 = vadd.f32 %v957, %v958
    %v960 = vrot.slane %v959, 2
    %v961 = vadd.f32 %v959, %v960
    %v962 = vrot.slane %v961, 1
    %v963 = vadd.f32 %v961, %v962
    %v964 = vadd.f32 %v954, %v956
    %v965 = vrot.slane %v964, 4
    %v966 = vadd.f32 %v964, %v965
    %v967 = vrot.slane %v966, 2
    %v968 = vadd.f32 %v966, %v967
    %v969 = vrot.slane %v968, 1
    %v970 = vadd.f32 %v968, %v969
    %v971 = vmul.f32 %v963, 0.00048828125
    %v972 = vmul.f32 %v970, 0.00048828125
    %v973 = vsub.f32 %v861, %v971
    %v974 = vsub.f32 %v862, %v971
    %v975 = vsub.f32 %v863, %v972
    %v976 = vsub.f32 %v864, %v972
    %v977 = vmul.f32 %v973, %v973
    %v978 = vmul.f32 %v974, %v974
    %v979 = vmul.f32 %v975, %v975
    %v980 = vmul.f32 %v976, %v976
    %981 = vadd.xlane.f32.xlu0 %v977
    %v982 = vpop.xlane.xlu0 %981
    %983 = vadd.xlane.f32.xlu0 %v978
    %v984 = vpop.xlane.xlu0 %983
    %985 = vadd.xlane.f32.xlu0 %v979
    %v986 = vpop.xlane.xlu0 %985
    %987 = vadd.xlane.f32.xlu0 %v980
    %v988 = vpop.xlane.xlu0 %987
    %v989 = vadd.f32 %v982, %v984
    %v990 = vrot.slane %v989, 4
    %v991 = vadd.f32 %v989, %v990
    %v992 = vrot.slane %v991, 2
    %v993 = vadd.f32 %v991, %v992
    %v994 = vrot.slane %v993, 1
    %v995 = vadd.f32 %v993, %v994
    %v996 = vadd.f32 %v986, %v988
    %v997 = vrot.slane %v996, 4
    %v998 = vadd.f32 %v996, %v997
    %v999 = vrot.slane %v998, 2
    %v1000 = vadd.f32 %v998, %v999
    %v1001 = vrot.slane %v1000, 1
    %v1002 = vadd.f32 %v1000, %v1001
    %v1003 = vmul.f32 %v995, 0.00048828125
    %v1004 = vmul.f32 %v1002, 0.00048828125
    %v1005 = vadd.f32 %v1003, 1e-05
    %v1006 = vadd.f32 %v1004, 1e-05
    %v1007 = vrsqrt.pop %v1005
    %v1008 = vmul.f32 %v1007, %v1005
    %v1009 = vmul.f32 %v1008, %v1007
    %v1010 = vmul.f32 0.5, %v1009
    %v1011 = vsub.f32 1.5, %v1010
    %v1012 = vmul.f32 %v1007, %v1011
    %vm1013 = vweird.f32 %v1005
    %vm1014 = vweird.f32 %v1007
    %vm1015 = vmor %vm1013, %vm1014
    %v1016 = vsel %vm1015, %v1007, %v1012
    %v1017 = vrsqrt.pop %v1006
    %v1018 = vmul.f32 %v1017, %v1006
    %v1019 = vmul.f32 %v1018, %v1017
    %v1020 = vmul.f32 0.5, %v1019
    %v1021 = vsub.f32 1.5, %v1020
    %v1022 = vmul.f32 %v1017, %v1021
    %vm1023 = vweird.f32 %v1006
    %vm1024 = vweird.f32 %v1017
    %vm1025 = vmor %vm1023, %vm1024
    %v1026 = vsel %vm1025, %v1017, %v1022
    %v1027 = vmul.f32 %v973, %v1016
    %v1028 = vmul.f32 %v974, %v1016
    %v1029 = vmul.f32 %v975, %v1026
    %v1030 = vmul.f32 %v976, %v1026
    %v1031 = vmul.f32 %v1027, %v865
    %v1032 = vmul.f32 %v1028, %v866
    %v1033 = vmul.f32 %v1029, %v865
    %v1034 = vmul.f32 %v1030, %v866
    %v1035 = vadd.f32 %v1031, %v867
    %v1036 = vadd.f32 %v1032, %v868
    %v1037 = vadd.f32 %v1033, %v867
    %v1038 = vadd.f32 %v1034, %v868
    %1039 = vmatpush.msra.mxu0 %v899
    %1040 = vmatpush.msra.mxu0 %v897
    %1041 = vmatpush.msra.mxu0 %v895
    %1042 = vmatpush.msra.mxu0 %v893
    %1043 = vmatpush.msra.mxu0 %v891
    %1044 = vmatpush.msra.mxu0 %v889
    %1045 = vmatpush.msra.mxu0 %v887
    %1046 = vmatpush.msra.mxu0 %v885
    %1047 = vmatpush.msra.mxu0 %v883
    %1048 = vmatpush.msra.mxu0 %v881
    %1049 = vmatpush.msra.mxu0 %v879
    %1050 = vmatpush.msra.mxu0 %v877
    %1051 = vmatpush.msra.mxu0 %v875
    %1052 = vmatpush.msra.mxu0 %v873
    %1053 = vmatpush.msra.mxu0 %v871
    %1054 = vmatpush.msra.mxu0 %v869
    %1055 = vmatmul.f32.gmra.mxu0 %v1035
    %v1056 = vpop.f32.mrf.mxu0
    %v1057 = vadd.f32 0.0, %v1056
    %1058 = vmatmul.f32.gmra.mxu0 %v1036
    %v1059 = vpop.f32.mrf.mxu0
    %v1060 = vadd.f32 0.0, %v1059
    %1061 = vmatmul.f32.gmra.mxu0 %v1037
    %v1062 = vpop.f32.mrf.mxu0
    %v1063 = vadd.f32 0.0, %v1062
    %1064 = vmatmul.f32.gmra.mxu0 %v1038
    %v1065 = vpop.f32.mrf.mxu0
    %v1066 = vadd.f32 0.0, %v1065
    %1067 = vdwg.mxu0
    %1068 = vmatpush.msra.mxu0 %v900
    %1069 = vmatpush.msra.mxu0 %v898
    %1070 = vmatpush.msra.mxu0 %v896
    %1071 = vmatpush.msra.mxu0 %v894
    %1072 = vmatpush.msra.mxu0 %v892
    %1073 = vmatpush.msra.mxu0 %v890
    %1074 = vmatpush.msra.mxu0 %v888
    %1075 = vmatpush.msra.mxu0 %v886
    %1076 = vmatpush.msra.mxu0 %v884
    %1077 = vmatpush.msra.mxu0 %v882
    %1078 = vmatpush.msra.mxu0 %v880
    %1079 = vmatpush.msra.mxu0 %v878
    %1080 = vmatpush.msra.mxu0 %v876
    %1081 = vmatpush.msra.mxu0 %v874
    %1082 = vmatpush.msra.mxu0 %v872
    %1083 = vmatpush.msra.mxu0 %v870
    %1084 = vmatmul.f32.gmra.mxu0 %v1035
    %v1085 = vpop.f32.mrf.mxu0
    %v1086 = vadd.f32 0.0, %v1085
    %1087 = vmatmul.f32.gmra.mxu0 %v1036
    %v1088 = vpop.f32.mrf.mxu0
    %v1089 = vadd.f32 0.0, %v1088
    %1090 = vmatmul.f32.gmra.mxu0 %v1037
    %v1091 = vpop.f32.mrf.mxu0
    %v1092 = vadd.f32 0.0, %v1091
    %1093 = vmatmul.f32.gmra.mxu0 %v1038
    %v1094 = vpop.f32.mrf.mxu0
    %v1095 = vadd.f32 0.0, %v1094
    %1096 = vdwg.mxu0
    %vm1097 = vcmp.gt.f32.partialorder %v1057, 20.0
    %vm1098 = vcmp.gt.f32.partialorder %v1086, 20.0
    %vm1099 = vcmp.gt.f32.partialorder %v1060, 20.0
    %vm1100 = vcmp.gt.f32.partialorder %v1089, 20.0
    %vm1101 = vcmp.gt.f32.partialorder %v1063, 20.0
    %vm1102 = vcmp.gt.f32.partialorder %v1092, 20.0
    %vm1103 = vcmp.gt.f32.partialorder %v1066, 20.0
    %vm1104 = vcmp.gt.f32.partialorder %v1095, 20.0
    %v1105 = vmin.f32 %v1057, 20.0
    %v1106 = vmin.f32 %v1086, 20.0
    %v1107 = vmin.f32 %v1060, 20.0
    %v1108 = vmin.f32 %v1089, 20.0
    %v1109 = vmin.f32 %v1063, 20.0
    %v1110 = vmin.f32 %v1092, 20.0
    %v1111 = vmin.f32 %v1066, 20.0
    %v1112 = vmin.f32 %v1095, 20.0
    %v1113 = vmul.f32 %v1105, 1.442695
    %v1114 = vpow.pop %v1113
    %v1115 = vmul.f32 %v1106, 1.442695
    %v1116 = vpow.pop %v1115
    %v1117 = vmul.f32 %v1107, 1.442695
    %v1118 = vpow.pop %v1117
    %v1119 = vmul.f32 %v1108, 1.442695
    %v1120 = vpow.pop %v1119
    %v1121 = vmul.f32 %v1109, 1.442695
    %v1122 = vpow.pop %v1121
    %v1123 = vmul.f32 %v1110, 1.442695
    %v1124 = vpow.pop %v1123
    %v1125 = vmul.f32 %v1111, 1.442695
    %v1126 = vpow.pop %v1125
    %v1127 = vmul.f32 %v1112, 1.442695
    %v1128 = vpow.pop %v1127
    %v1129 = vadd.f32 %v1114, 1.0
    %v1130 = vlog2.pop %v1129
    %v1131 = vmul.f32 %v1130, 0.6931472
    %v1132 = vmul.f32 -0.5, %v1114
    %v1133 = vadd.f32 %v1132, 1.0
    %v1134 = vmul.f32 %v1133, %v1114
    %v1135 = vand.u32 2147483647, %v1114
    %vm1136 = vcmp.lt.f32.partialorder %v1135, 0.0004427343
    %v1137 = vsel %vm1136, %v1134, %v1131
    %v1138 = vadd.f32 %v1116, 1.0
    %v1139 = vlog2.pop %v1138
    %v1140 = vmul.f32 %v1139, 0.6931472
    %v1141 = vmul.f32 -0.5, %v1116
    %v1142 = vadd.f32 %v1141, 1.0
    %v1143 = vmul.f32 %v1142, %v1116
    %v1144 = vand.u32 2147483647, %v1116
    %vm1145 = vcmp.lt.f32.partialorder %v1144, 0.0004427343
    %v1146 = vsel %vm1145, %v1143, %v1140
    %v1147 = vadd.f32 %v1118, 1.0
    %v1148 = vlog2.pop %v1147
    %v1149 = vmul.f32 %v1148, 0.6931472
    %v1150 = vmul.f32 -0.5, %v1118
    %v1151 = vadd.f32 %v1150, 1.0
    %v1152 = vmul.f32 %v1151, %v1118
    %v1153 = vand.u32 2147483647, %v1118
    %vm1154 = vcmp.lt.f32.partialorder %v1153, 0.0004427343
    %v1155 = vsel %vm1154, %v1152, %v1149
    %v1156 = vadd.f32 %v1120, 1.0
    %v1157 = vlog2.pop %v1156
    %v1158 = vmul.f32 %v1157, 0.6931472
    %v1159 = vmul.f32 -0.5, %v1120
    %v1160 = vadd.f32 %v1159, 1.0
    %v1161 = vmul.f32 %v1160, %v1120
    %v1162 = vand.u32 2147483647, %v1120
    %vm1163 = vcmp.lt.f32.partialorder %v1162, 0.0004427343
    %v1164 = vsel %vm1163, %v1161, %v1158
    %v1165 = vadd.f32 %v1122, 1.0
    %v1166 = vlog2.pop %v1165
    %v1167 = vmul.f32 %v1166, 0.6931472
    %v1168 = vmul.f32 -0.5, %v1122
    %v1169 = vadd.f32 %v1168, 1.0
    %v1170 = vmul.f32 %v1169, %v1122
    %v1171 = vand.u32 2147483647, %v1122
    %vm1172 = vcmp.lt.f32.partialorder %v1171, 0.0004427343
    %v1173 = vsel %vm1172, %v1170, %v1167
    %v1174 = vadd.f32 %v1124, 1.0
    %v1175 = vlog2.pop %v1174
    %v1176 = vmul.f32 %v1175, 0.6931472
    %v1177 = vmul.f32 -0.5, %v1124
    %v1178 = vadd.f32 %v1177, 1.0
    %v1179 = vmul.f32 %v1178, %v1124
    %v1180 = vand.u32 2147483647, %v1124
    %vm1181 = vcmp.lt.f32.partialorder %v1180, 0.0004427343
    %v1182 = vsel %vm1181, %v1179, %v1176
    %v1183 = vadd.f32 %v1126, 1.0
    %v1184 = vlog2.pop %v1183
    %v1185 = vmul.f32 %v1184, 0.6931472
    %v1186 = vmul.f32 -0.5, %v1126
    %v1187 = vadd.f32 %v1186, 1.0
    %v1188 = vmul.f32 %v1187, %v1126
    %v1189 = vand.u32 2147483647, %v1126
    %vm1190 = vcmp.lt.f32.partialorder %v1189, 0.0004427343
    %v1191 = vsel %vm1190, %v1188, %v1185
    %v1192 = vadd.f32 %v1128, 1.0
    %v1193 = vlog2.pop %v1192
    %v1194 = vmul.f32 %v1193, 0.6931472
    %v1195 = vmul.f32 -0.5, %v1128
    %v1196 = vadd.f32 %v1195, 1.0
    %v1197 = vmul.f32 %v1196, %v1128
    %v1198 = vand.u32 2147483647, %v1128
    %vm1199 = vcmp.lt.f32.partialorder %v1198, 0.0004427343
    %v1200 = vsel %vm1199, %v1197, %v1194
    %v1201 = vsel %vm1097, %v1057, %v1137
    %v1202 = vsel %vm1098, %v1086, %v1146
    %v1203 = vsel %vm1099, %v1060, %v1155
    %v1204 = vsel %vm1100, %v1089, %v1164
    %v1205 = vsel %vm1101, %v1063, %v1173
    %v1206 = vsel %vm1102, %v1092, %v1182
    %v1207 = vsel %vm1103, %v1066, %v1191
    %v1208 = vsel %vm1104, %v1095, %v1200
    %1209 = vmatpush.msra.mxu0 %v948
    %1210 = vmatpush.msra.mxu0 %v947
    %1211 = vmatpush.msra.mxu0 %v946
    %1212 = vmatpush.msra.mxu0 %v945
    %1213 = vmatpush.msra.mxu0 %v944
    %1214 = vmatpush.msra.mxu0 %v943
    %1215 = vmatpush.msra.mxu0 %v942
    %1216 = vmatpush.msra.mxu0 %v941
    %1217 = vmatpush.msra.mxu0 %v940
    %1218 = vmatpush.msra.mxu0 %v939
    %1219 = vmatpush.msra.mxu0 %v938
    %1220 = vmatpush.msra.mxu0 %v937
    %1221 = vmatpush.msra.mxu0 %v936
    %1222 = vmatpush.msra.mxu0 %v935
    %1223 = vmatpush.msra.mxu0 %v934
    %1224 = vmatpush.msra.mxu0 %v933
    %1225 = vmatmul.f32.gmra.mxu0 %v229
    %v1226 = vpop.f32.mrf.mxu0
    %v1227 = vadd.f32 0.0, %v1226
    %1228 = vmatmul.f32.gmra.mxu0 %v230
    %v1229 = vpop.f32.mrf.mxu0
    %v1230 = vadd.f32 0.0, %v1229
    %1231 = vmatmul.f32.gmra.mxu0 %v231
    %v1232 = vpop.f32.mrf.mxu0
    %v1233 = vadd.f32 0.0, %v1232
    %1234 = vmatmul.f32.gmra.mxu0 %v232
    %v1235 = vpop.f32.mrf.mxu0
    %v1236 = vadd.f32 0.0, %v1235
    %1237 = vdwg.mxu0
    %1238 = vmatpush.msra.mxu0 %v916
    %1239 = vmatpush.msra.mxu0 %v915
    %1240 = vmatpush.msra.mxu0 %v914
    %1241 = vmatpush.msra.mxu0 %v913
    %1242 = vmatpush.msra.mxu0 %v912
    %1243 = vmatpush.msra.mxu0 %v911
    %1244 = vmatpush.msra.mxu0 %v910
    %1245 = vmatpush.msra.mxu0 %v909
    %1246 = vmatpush.msra.mxu0 %v908
    %1247 = vmatpush.msra.mxu0 %v907
    %1248 = vmatpush.msra.mxu0 %v906
    %1249 = vmatpush.msra.mxu0 %v905
    %1250 = vmatpush.msra.mxu0 %v904
    %1251 = vmatpush.msra.mxu0 %v903
    %1252 = vmatpush.msra.mxu0 %v902
    %1253 = vmatpush.msra.mxu0 %v901
    %1254 = vmatmul.f32.gmra.mxu0 %v1201
    %v1255 = vpop.f32.mrf.mxu0
    %v1256 = vadd.f32 %v1227, %v1255
    %1257 = vmatmul.f32.gmra.mxu0 %v1203
    %v1258 = vpop.f32.mrf.mxu0
    %v1259 = vadd.f32 %v1230, %v1258
    %1260 = vmatmul.f32.gmra.mxu0 %v1205
    %v1261 = vpop.f32.mrf.mxu0
    %v1262 = vadd.f32 %v1233, %v1261
    %1263 = vmatmul.f32.gmra.mxu0 %v1207
    %v1264 = vpop.f32.mrf.mxu0
    %v1265 = vadd.f32 %v1236, %v1264
    %1266 = vdwg.mxu0
    %1267 = vmatpush.msra.mxu0 %v932
    %1268 = vmatpush.msra.mxu0 %v931
    %1269 = vmatpush.msra.mxu0 %v930
    %1270 = vmatpush.msra.mxu0 %v929
    %1271 = vmatpush.msra.mxu0 %v928
    %1272 = vmatpush.msra.mxu0 %v927
    %1273 = vmatpush.msra.mxu0 %v926
    %1274 = vmatpush.msra.mxu0 %v925
    %1275 = vmatpush.msra.mxu0 %v924
    %1276 = vmatpush.msra.mxu0 %v923
    %1277 = vmatpush.msra.mxu0 %v922
    %1278 = vmatpush.msra.mxu0 %v921
    %1279 = vmatpush.msra.mxu0 %v920
    %1280 = vmatpush.msra.mxu0 %v919
    %1281 = vmatpush.msra.mxu0 %v918
    %1282 = vmatpush.msra.mxu0 %v917
    %1283 = vmatmul.f32.gmra.mxu0 %v1202
    %v1284 = vpop.f32.mrf.mxu0
    %v1285 = vadd.f32 %v1256, %v1284
    %1286 = vmatmul.f32.gmra.mxu0 %v1204
    %v1287 = vpop.f32.mrf.mxu0
    %v1288 = vadd.f32 %v1259, %v1287
    %1289 = vmatmul.f32.gmra.mxu0 %v1206
    %v1290 = vpop.f32.mrf.mxu0
    %v1291 = vadd.f32 %v1262, %v1290
    %1292 = vmatmul.f32.gmra.mxu0 %v1208
    %v1293 = vpop.f32.mrf.mxu0
    %v1294 = vadd.f32 %v1265, %v1293
    %1295 = vdwg.mxu0
    %1296 = vst [vmem:[#allocation22] sm:$0xff] %v1285
    %1297 = vst [vmem:[#allocation22 + $0x8] sm:$0xff] %v1288
    %1298 = vst [vmem:[#allocation22 + $0x10] sm:$0xff] %v1291
    %1299 = vst [vmem:[#allocation22 + $0x18] sm:$0xff] %v1294
    // Predicated region
    $region98: #{tpu_custom_call.1} parent=1 // pred_check
      _
    $region99: #{tpu_custom_call.1} parent=1 // pred_check_branch
      %1301 = sbr.rel (0) target = $region101
    $region100: #{tpu_custom_call.1} parent=1 // pred_region
      %1303 = vsyncadd [#allocation4], 0
      %s1304 = sshll.u32 [#allocation22], 4
      %s1305 = int_to_ptr.vmem [resolvable:$true] %s1304
      %s1306 = sshll.u32 %s12, 4
      %s1307 = int_to_ptr.hbm [resolvable:$true] %s1306
      %1312 = dma.vmem_to_hbm [thread:$0]  %s1305, 512, %s1307, [#allocation4], 128, 128, 8
    $region101: #{tpu_custom_call.1} parent=1 // pred_fallthru
      _
    // Predicated region
    $region102: #{tpu_custom_call.1} parent=1 // pred_check
      _
    $region103: #{tpu_custom_call.1} parent=1 // pred_check_branch
      %1314 = sbr.rel (0) target = $region105
    $region104: #{tpu_custom_call.1} parent=1 // pred_region
      %1316 = dma.done [#allocation4], 512
    $region105: #{tpu_custom_call.1} parent=1 // pred_fallthru
      _
    %1317 = vsyncpa [#allocation3], 1
    %1318 = vsyncpa [#allocation6], 1
    %1319 = vsyncpa [#allocation9], 1
    %1320 = vsyncpa [#allocation12], 1
    %1321 = vsyncpa [#allocation15], 1
    %1322 = vsyncpa [#allocation18], 1
    %1323 = vsyncpa [#allocation21], 1
    %1324 = vsyncpa [#allocation4], 1

</llo_original>
